<compile_context>
chip_gen: v5e
topology: v5e:2x2
jax: 0.10.0
libtpu: 0.0.40
codegen_flags: <defaults>
</compile_context>

<pallas_src>
import functools

import numpy as np
import jax
import jax.numpy as jnp
from jax.experimental import pallas as pl
from jax.experimental.pallas import tpu as pltpu


def make_teacher_temp_schedule(warmup_teacher_temp, teacher_temp,
                               warmup_teacher_temp_epochs, nepochs):
    return np.concatenate((
        np.linspace(warmup_teacher_temp, teacher_temp, warmup_teacher_temp_epochs),
        np.ones(nepochs - warmup_teacher_temp_epochs) * teacher_temp,
    ))


def _make_dino_kernel(G, N, B, bt, inv_student_temp, center_momentum):
    inv_student_temp = float(inv_student_temp)
    m = float(center_momentum)
    inv_rows = 1.0 / float(G * B)                  # for the batch center
    loss_scale = 1.0 / float(B * G * (N - 1))      # 1 / (batch * n_loss_terms)

    def kernel(inv_temp_ref, teacher_ref, student_ref, center_ref,
               loss_ref, center_out_ref,
               q_ref, qsum_ref, krow_ref, acc_ps_ref, acc_kz_ref, cacc_ref):
        bi = pl.program_id(0)          # batch tile
        v = pl.program_id(1)           # student crop
        nb = pl.num_programs(0)
        nv = pl.num_programs(1)

        # ---- once per kernel: zero the running accumulators ----------------
        @pl.when((bi == 0) & (v == 0))
        def _zero():
            acc_ps_ref[...] = jnp.zeros_like(acc_ps_ref)
            acc_kz_ref[...] = jnp.zeros_like(acc_kz_ref)
            cacc_ref[...] = jnp.zeros_like(cacc_ref)

        # ---- once per batch tile: teacher softmax for all G crops ----------
        @pl.when(v == 0)
        def _teacher():
            inv_temp = inv_temp_ref[0, 0]
            t = teacher_ref[...]                                # (G, bt, D) f32
            z = (t - center_ref[...]) * inv_temp
            z = z - jnp.max(z, axis=-1, keepdims=True)
            e = jnp.exp(z)
            q = e / jnp.sum(e, axis=-1, keepdims=True)          # exact normalize
            q_bf = q.astype(jnp.bfloat16)                       # bf16 scratch
            q_ref[...] = q_bf
            qb = q_bf.astype(jnp.float32)                       # rounded values
            qs_bf = jnp.sum(qb, axis=0).astype(jnp.bfloat16)    # (bt, D)
            qsum_ref[...] = qs_bf
            # Per-row column sums of the *rounded* probabilities so the
            # log-partition term below is exact w.r.t. what the hot loop uses.
            krow_ref[G] = jnp.sum(qs_bf.astype(jnp.float32), axis=-1,
                                  keepdims=True)                # (bt, 1)
            for g in range(G):                                  # static, tiny
                krow_ref[g] = jnp.sum(qb[g], axis=-1, keepdims=True)
            # Partial sum for the center momentum update (raw teacher rows).
            cacc_ref[...] += jnp.sum(jnp.sum(t, axis=0), axis=0, keepdims=True)

        # ---- last batch tile: emit the updated center -----------------------
        @pl.when((v == 0) & (bi == nb - 1))
        def _center_out():
            bc = cacc_ref[...] * inv_rows
            center_out_ref[...] = center_ref[...] * m + bc * (1.0 - m)

        # ---- every step: student crop v on batch tile bi --------------------
        s = student_ref[...] * inv_student_temp                 # (bt, D) f32
        row_max = jnp.max(s, axis=-1, keepdims=True)            # (bt, 1)
        log_z = row_max + jnp.log(
            jnp.sum(jnp.exp(s - row_max), axis=-1, keepdims=True))
        qs = qsum_ref[...].astype(jnp.float32)                  # (bt, D)

        # sum_d(-q_eff * log_softmax(s)) == -sum_d(q_eff*s) + sum_d(q_eff)*logZ
        # Accumulated elementwise (VALU only); collapsed once at the last step.
        @pl.when(v < G)
        def _global_crop():            # exclude the matching teacher crop
            q_eff = qs - q_ref[v].astype(jnp.float32)
            acc_ps_ref[...] += q_eff * s
            acc_kz_ref[...] += (krow_ref[G] - krow_ref[v]) * log_z

        @pl.when(v >= G)
        def _local_crop():             # all G teacher crops contribute
            acc_ps_ref[...] += qs * s
            acc_kz_ref[...] += krow_ref[G] * log_z

        # ---- very last step: collapse accumulators to the scalar loss -------
        @pl.when((bi == nb - 1) & (v == nv - 1))
        def _finalize():
            total = jnp.sum(acc_kz_ref[...]) - jnp.sum(acc_ps_ref[...])
            loss_ref[0, 0] = total * loss_scale

    return kernel


@functools.partial(
    jax.jit,
    static_argnames=("G", "N", "bt", "student_temp", "center_momentum",
                     "single_buffer_invariant"))
def _dino_forward(inv_temp, teacher_output, student_output, center, *,
                  G, N, bt, student_temp, center_momentum,
                  single_buffer_invariant=True):
    GB, D = teacher_output.shape
    B = GB // G
    assert GB == G * B
    assert student_output.shape == (N * B, D)
    assert B % bt == 0
    nb = B // bt

    teacher3 = teacher_output.reshape(G, B, D).astype(jnp.float32)
    student3 = student_output.reshape(N, B, D).astype(jnp.float32)
    center = center.astype(jnp.float32)

    kernel = _make_dino_kernel(G, N, B, bt, 1.0 / student_temp, center_momentum)

    # Review item: invariant blocks do not need the default double buffer.
    invariant_kw = (dict(pipeline_mode=pl.Buffered(1))
                    if single_buffer_invariant else {})

    grid_spec = pltpu.PrefetchScalarGridSpec(
        num_scalar_prefetch=0,
        grid=(nb, N),
        in_specs=[
            pl.BlockSpec((1, 1), lambda bi, v: (0, 0),
                         memory_space=pltpu.SMEM),              # 1/teacher_temp
            pl.BlockSpec((G, bt, D), lambda bi, v: (0, bi, 0)),  # teacher tile
            pl.BlockSpec((None, bt, D), lambda bi, v: (v, bi, 0)),  # student tile
            pl.BlockSpec((1, D), lambda bi, v: (0, 0),
                         **invariant_kw),                        # old center
        ],
        out_specs=[
            pl.BlockSpec((1, 1), lambda bi, v: (0, 0),
                         memory_space=pltpu.SMEM),               # scalar loss
            pl.BlockSpec((1, D), lambda bi, v: (0, 0),
                         **invariant_kw),                        # new center
        ],
        scratch_shapes=[
            pltpu.VMEM((G, bt, D), jnp.bfloat16),     # teacher probs per crop
            pltpu.VMEM((bt, D), jnp.bfloat16),        # sum of teacher probs
            pltpu.VMEM((G + 1, bt, 1), jnp.float32),  # per-row prob column sums
            pltpu.VMEM((bt, D), jnp.float32),         # sum_d(q_eff*s) accum
            pltpu.VMEM((bt, 1), jnp.float32),         # sum_d(q_eff)*logZ accum
            pltpu.VMEM((1, D), jnp.float32),          # raw-teacher column sums
        ],
    )

    loss2d, new_center = pl.pallas_call(
        kernel,
        out_shape=(jax.ShapeDtypeStruct((1, 1), jnp.float32),
                   jax.ShapeDtypeStruct((1, D), jnp.float32)),
        grid_spec=grid_spec,
        compiler_params=pltpu.CompilerParams(
            dimension_semantics=("arbitrary", "arbitrary"),
            vmem_limit_bytes=64 * 1024 * 1024),
    )(inv_temp, teacher3, student3, center)

    return loss2d[0, 0], new_center


class DINOLossPallas:
    """JAX/Pallas port of DINOLoss (two_token=False path)."""

    def __init__(self, out_dim, ncrops, warmup_teacher_temp, teacher_temp,
                 warmup_teacher_temp_epochs, nepochs, student_temp=0.1,
                 center_momentum=0.9, global_crops=2, batch_tile=None):
        self.out_dim = out_dim
        self.n_crops = ncrops
        self.global_crops = global_crops
        self.student_temp = float(student_temp)
        self.center_momentum = float(center_momentum)
        self.batch_tile = batch_tile
        self.center = jnp.zeros((1, out_dim), dtype=jnp.float32)
        self.teacher_temp_schedule = make_teacher_temp_schedule(
            warmup_teacher_temp, teacher_temp, warmup_teacher_temp_epochs, nepochs)
        self._single_buffer = True  # flipped off if pl.Buffered(1) unsupported

    def _pick_batch_tile(self, B):
        if self.batch_tile is not None and B % self.batch_tile == 0:
            return self.batch_tile
        for bt in (16, 8):           # bf16 scratch tile-aligned at 16 sublanes
            if B % bt == 0:
                return bt
        return B

    def __call__(self, student_output, teacher_output, epoch):
        temp = float(self.teacher_temp_schedule[int(epoch)])
        # Runtime SMEM scalar -> the per-epoch temperature never retraces.
        inv_temp = jnp.full((1, 1), 1.0 / temp, dtype=jnp.float32)
        B = teacher_output.shape[0] // self.global_crops
        bt = self._pick_batch_tile(B)
        kwargs = dict(G=self.global_crops, N=self.n_crops, bt=bt,
                      student_temp=self.student_temp,
                      center_momentum=self.center_momentum)

        loss = new_center = None
        if self._single_buffer:
            try:
                loss, new_center = _dino_forward(
                    inv_temp, teacher_output, student_output, self.center,
                    single_buffer_invariant=True, **kwargs)
            except Exception:
                # Fallback for jax versions that reject pl.Buffered(1).
                self._single_buffer = False
        if not self._single_buffer:
            loss, new_center = _dino_forward(
                inv_temp, teacher_output, student_output, self.center,
                single_buffer_invariant=False, **kwargs)

        self.center = new_center
        return loss


def _reference_loss(student_output, teacher_output, center, temp, student_temp,
                    ncrops, global_crops, center_momentum):
    # Pure-JAX mirror of the PyTorch forward (two_token=False).
    G, N = global_crops, ncrops
    B = teacher_output.shape[0] // G
    s = student_output / student_temp
    student_chunks = [s[i * B:(i + 1) * B] for i in range(N)]
    t = jax.nn.softmax((teacher_output - center) / temp, axis=-1)
    teacher_chunks = [t[i * B:(i + 1) * B] for i in range(G)]
    total, n_terms = 0.0, 0
    for iq, q in enumerate(teacher_chunks):
        for v in range(N):
            if v == iq:
                continue
            ls = jax.nn.log_softmax(student_chunks[v], axis=-1)
            total += jnp.mean(jnp.sum(-q * ls, axis=-1))
            n_terms += 1
    total = total / n_terms
    bc = jnp.sum(teacher_output, axis=0, keepdims=True) / teacher_output.shape[0]
    new_center = center * center_momentum + bc * (1.0 - center_momentum)
    return total, new_center


if __name__ == "__main__":
    out_dim = 128            # multiple of 128 -> full lane utilization
    ncrops = 4
    global_crops = 2
    B = 32                   # batch per crop; tiled into batch_tile=16 rows

    loss_mod = DINOLossPallas(
        out_dim=out_dim, ncrops=ncrops,
        warmup_teacher_temp=0.04, teacher_temp=0.07,
        warmup_teacher_temp_epochs=2, nepochs=10,
        student_temp=0.1, center_momentum=0.9, global_crops=global_crops,
        batch_tile=16)

    key = jax.random.PRNGKey(0)
    k1, k2 = jax.random.split(key)
    student_output = jax.random.normal(k1, (ncrops * B, out_dim), jnp.float32)
    teacher_output = jax.random.normal(k2, (global_crops * B, out_dim),
                                       jnp.float32)

    # Two epochs: exercises the temperature schedule (no retrace) and the
    # stateful center update feeding back into the next call.
    for epoch in range(2):
        center_before = loss_mod.center
        loss = loss_mod(student_output, teacher_output, epoch)
        loss = jax.block_until_ready(loss)
        new_center = jax.block_until_ready(loss_mod.center)

        temp = float(loss_mod.teacher_temp_schedule[epoch])
        ref_loss, ref_center = _reference_loss(
            student_output, teacher_output, center_before, temp,
            loss_mod.student_temp, ncrops, global_crops,
            loss_mod.center_momentum)
        # bf16 teacher-probability scratch -> allow ~1% slack on the loss.
        assert jnp.allclose(loss, ref_loss, atol=1e-2, rtol=1e-2), (
            epoch, float(loss), float(ref_loss))
        assert jnp.allclose(new_center, ref_center, atol=1e-5, rtol=1e-5), epoch

    print("KERNEL_OK")
</pallas_src>

<mosaic_0001>
module attributes {stable_mosaic.version = 11 : i64} {
  func.func @kernel(%arg0: i32, %arg1: i32, %arg2: memref<1x1xf32, #tpu.memory_space<smem>>, %arg3: memref<2x16x128xf32, #tpu.memory_space<vmem>>, %arg4: memref<1x16x128xf32, #tpu.memory_space<vmem>>, %arg5: memref<1x128xf32, #tpu.memory_space<vmem>>, %arg6: memref<1x1xf32, #tpu.memory_space<smem>>, %arg7: memref<1x128xf32, #tpu.memory_space<vmem>>, %arg8: memref<2x16x128xbf16, #tpu.memory_space<vmem>>, %arg9: memref<16x128xbf16, #tpu.memory_space<vmem>>, %arg10: memref<3x16x1xf32, #tpu.memory_space<vmem>>, %arg11: memref<16x128xf32, #tpu.memory_space<vmem>>, %arg12: memref<16x1xf32, #tpu.memory_space<vmem>>, %arg13: memref<1x128xf32, #tpu.memory_space<vmem>>) attributes {dimension_semantics = [#tpu.dimension_semantics<arbitrary>, #tpu.dimension_semantics<arbitrary>], iteration_bounds = array<i64: 2, 4>, scalar_prefetch = 0 : i64, scratch_operands = 6 : i64, tpu.core_type = #tpu.core_type<tc>, window_params = [{transform_indices = @transform_0, window_bounds = array<i64: 1, 1>}, {transform_indices = @transform_1, window_bounds = array<i64: 2, 16, 128>}, {transform_indices = @transform_2, window_bounds = array<i64: 1, 16, 128>}, {pipeline_mode = #tpu.pipeline_mode<synchronous>, transform_indices = @transform_3, window_bounds = array<i64: 1, 128>}, {transform_indices = @transform_4, window_bounds = array<i64: 1, 1>}, {pipeline_mode = #tpu.pipeline_mode<synchronous>, transform_indices = @transform_5, window_bounds = array<i64: 1, 128>}]} {
    %c0_i32 = arith.constant 0 : i32
    %0 = arith.cmpi eq, %arg0, %c0_i32 : i32
    %c0_i32_0 = arith.constant 0 : i32
    %1 = arith.cmpi eq, %arg1, %c0_i32_0 : i32
    %2 = arith.andi %0, %1 : i1
    %3 = arith.extui %2 : i1 to i32
    %c0_i32_1 = arith.constant 0 : i32
    %4 = arith.cmpi ne, %3, %c0_i32_1 : i32
    scf.if %4 {
      %cst_17 = arith.constant 0.000000e+00 : f32
      %39 = vector.broadcast %cst_17 : f32 to vector<16x128xf32>
      %c0_18 = arith.constant 0 : index
      %c0_19 = arith.constant 0 : index
      %40 = vector.load %arg11[%c0_18, %c0_19] : memref<16x128xf32, #tpu.memory_space<vmem>>, vector<16x128xf32>
      tpu.vector_store %arg11[%c0_18, %c0_19], %39 {strides = array<i32>} : memref<16x128xf32, #tpu.memory_space<vmem>>, vector<16x128xf32>,
      %cst_20 = arith.constant 0.000000e+00 : f32
      %41 = vector.broadcast %cst_20 : f32 to vector<16x1xf32>
      %c0_21 = arith.constant 0 : index
      %c0_22 = arith.constant 0 : index
      %42 = vector.load %arg12[%c0_21, %c0_22] : memref<16x1xf32, #tpu.memory_space<vmem>>, vector<16x1xf32>
      tpu.vector_store %arg12[%c0_21, %c0_22], %41 {strides = array<i32>} : memref<16x1xf32, #tpu.memory_space<vmem>>, vector<16x1xf32>,
      %cst_23 = arith.constant 0.000000e+00 : f32
      %43 = vector.broadcast %cst_23 : f32 to vector<1x128xf32>
      %c0_24 = arith.constant 0 : index
      %c0_25 = arith.constant 0 : index
      %44 = vector.load %arg13[%c0_24, %c0_25] : memref<1x128xf32, #tpu.memory_space<vmem>>, vector<1x128xf32>
      tpu.vector_store %arg13[%c0_24, %c0_25], %43 {strides = array<i32>} : memref<1x128xf32, #tpu.memory_space<vmem>>, vector<1x128xf32>,
    } else {
    }
    %c0_i32_2 = arith.constant 0 : i32
    %5 = arith.cmpi eq, %arg1, %c0_i32_2 : i32
    %6 = arith.extui %5 : i1 to i32
    %c0_i32_3 = arith.constant 0 : i32
    %7 = arith.cmpi ne, %6, %c0_i32_3 : i32
    scf.if %7 {
      %c0_17 = arith.constant 0 : index
      %c0_18 = arith.constant 0 : index
      %39 = memref.load %arg2[%c0_17, %c0_18] : memref<1x1xf32, #tpu.memory_space<smem>>
      %c0_19 = arith.constant 0 : index
      %c0_20 = arith.constant 0 : index
      %c0_21 = arith.constant 0 : index
      %40 = vector.load %arg3[%c0_19, %c0_20, %c0_21] : memref<2x16x128xf32, #tpu.memory_space<vmem>>, vector<2x16x128xf32>
      %c0_22 = arith.constant 0 : index
      %c0_23 = arith.constant 0 : index
      %41 = vector.load %arg5[%c0_22, %c0_23] : memref<1x128xf32, #tpu.memory_space<vmem>>, vector<1x128xf32>
      %42 = vector.shape_cast %41 : vector<1x128xf32> to vector<1x1x128xf32>
      %43 = vector.broadcast %42 : vector<1x1x128xf32> to vector<2x16x128xf32>
      %44 = arith.subf %40, %43 : vector<2x16x128xf32>
      %45 = vector.broadcast %39 : f32 to vector<2x16x128xf32>
      %46 = arith.mulf %44, %45 : vector<2x16x128xf32>
      %cst_24 = arith.constant dense<0xFF800000> : vector<2x16xf32>
      %47 = vector.multi_reduction <maximumf>, %46, %cst_24 [2] : vector<2x16x128xf32> to vector<2x16xf32>
      %48 = vector.shape_cast %47 : vector<2x16xf32> to vector<2x16x1xf32>
      %49 = vector.broadcast %48 : vector<2x16x1xf32> to vector<2x16x128xf32>
      %50 = arith.subf %46, %49 : vector<2x16x128xf32>
      %51 = math.exp %50 : vector<2x16x128xf32>
      %cst_25 = arith.constant dense<0.000000e+00> : vector<2x16xf32>
      %52 = vector.multi_reduction <add>, %51, %cst_25 [2] : vector<2x16x128xf32> to vector<2x16xf32>
      %53 = vector.shape_cast %52 : vector<2x16xf32> to vector<2x16x1xf32>
      %54 = vector.broadcast %53 : vector<2x16x1xf32> to vector<2x16x128xf32>
      %55 = arith.divf %51, %54 : vector<2x16x128xf32>
      %56 = arith.truncf %55 : vector<2x16x128xf32> to vector<2x16x128xbf16>
      %c0_26 = arith.constant 0 : index
      %c0_27 = arith.constant 0 : index
      %c0_28 = arith.constant 0 : index
      %57 = vector.load %arg8[%c0_26, %c0_27, %c0_28] : memref<2x16x128xbf16, #tpu.memory_space<vmem>>, vector<2x16x128xbf16>
      tpu.vector_store %arg8[%c0_26, %c0_27, %c0_28], %56 {strides = array<i32>} : memref<2x16x128xbf16, #tpu.memory_space<vmem>>, vector<2x16x128xbf16>,
      %58 = arith.extf %56 : vector<2x16x128xbf16> to vector<2x16x128xf32>
      %cst_29 = arith.constant dense<0.000000e+00> : vector<16x128xf32>
      %59 = vector.multi_reduction <add>, %58, %cst_29 [0] : vector<2x16x128xf32> to vector<16x128xf32>
      %60 = arith.truncf %59 : vector<16x128xf32> to vector<16x128xbf16>
      %c0_30 = arith.constant 0 : index
      %c0_31 = arith.constant 0 : index
      %61 = vector.load %arg9[%c0_30, %c0_31] : memref<16x128xbf16, #tpu.memory_space<vmem>>, vector<16x128xbf16>
      tpu.vector_store %arg9[%c0_30, %c0_31], %60 {strides = array<i32>} : memref<16x128xbf16, #tpu.memory_space<vmem>>, vector<16x128xbf16>,
      %62 = arith.extf %60 : vector<16x128xbf16> to vector<16x128xf32>
      %cst_32 = arith.constant dense<0.000000e+00> : vector<16xf32>
      %63 = vector.multi_reduction <add>, %62, %cst_32 [1] : vector<16x128xf32> to vector<16xf32>
      %64 = vector.shape_cast %63 : vector<16xf32> to vector<16x1xf32>
      %c2 = arith.constant 2 : index
      %c0_33 = arith.constant 0 : index
      %c0_34 = arith.constant 0 : index
      %65 = vector.load %arg10[%c2, %c0_33, %c0_34] : memref<3x16x1xf32, #tpu.memory_space<vmem>>, vector<1x16x1xf32>
      %66 = vector.shape_cast %65 : vector<1x16x1xf32> to vector<16x1xf32>
      %67 = vector.shape_cast %64 : vector<16x1xf32> to vector<1x16x1xf32>
      tpu.vector_store %arg10[%c2, %c0_33, %c0_34], %67 {strides = array<i32>} : memref<3x16x1xf32, #tpu.memory_space<vmem>>, vector<1x16x1xf32>,
      %68 = vector.extract_strided_slice %58 {offsets = [0, 0, 0], sizes = [1, 16, 128], strides = [1, 1, 1]} : vector<2x16x128xf32> to vector<1x16x128xf32>
      %69 = vector.shape_cast %68 : vector<1x16x128xf32> to vector<16x128xf32>
      %cst_35 = arith.constant dense<0.000000e+00> : vector<16xf32>
      %70 = vector.multi_reduction <add>, %69, %cst_35 [1] : vector<16x128xf32> to vector<16xf32>
      %71 = vector.shape_cast %70 : vector<16xf32> to vector<16x1xf32>
      %c0_36 = arith.constant 0 : index
      %c0_37 = arith.constant 0 : index
      %c0_38 = arith.constant 0 : index
      %72 = vector.load %arg10[%c0_36, %c0_37, %c0_38] : memref<3x16x1xf32, #tpu.memory_space<vmem>>, vector<1x16x1xf32>
      %73 = vector.shape_cast %72 : vector<1x16x1xf32> to vector<16x1xf32>
      %74 = vector.shape_cast %71 : vector<16x1xf32> to vector<1x16x1xf32>
      tpu.vector_store %arg10[%c0_36, %c0_37, %c0_38], %74 {strides = array<i32>} : memref<3x16x1xf32, #tpu.memory_space<vmem>>, vector<1x16x1xf32>,
      %75 = vector.extract_strided_slice %58 {offsets = [1, 0, 0], sizes = [1, 16, 128], strides = [1, 1, 1]} : vector<2x16x128xf32> to vector<1x16x128xf32>
      %76 = vector.shape_cast %75 : vector<1x16x128xf32> to vector<16x128xf32>
      %cst_39 = arith.constant dense<0.000000e+00> : vector<16xf32>
      %77 = vector.multi_reduction <add>, %76, %cst_39 [1] : vector<16x128xf32> to vector<16xf32>
      %78 = vector.shape_cast %77 : vector<16xf32> to vector<16x1xf32>
      %c1 = arith.constant 1 : index
      %c0_40 = arith.constant 0 : index
      %c0_41 = arith.constant 0 : index
      %79 = vector.load %arg10[%c1, %c0_40, %c0_41] : memref<3x16x1xf32, #tpu.memory_space<vmem>>, vector<1x16x1xf32>
      %80 = vector.shape_cast %79 : vector<1x16x1xf32> to vector<16x1xf32>
      %81 = vector.shape_cast %78 : vector<16x1xf32> to vector<1x16x1xf32>
      tpu.vector_store %arg10[%c1, %c0_40, %c0_41], %81 {strides = array<i32>} : memref<3x16x1xf32, #tpu.memory_space<vmem>>, vector<1x16x1xf32>,
      %c0_42 = arith.constant 0 : index
      %c0_43 = arith.constant 0 : index
      %82 = vector.load %arg13[%c0_42, %c0_43] : memref<1x128xf32, #tpu.memory_space<vmem>>, vector<1x128xf32>
      %cst_44 = arith.constant dense<0.000000e+00> : vector<16x128xf32>
      %83 = vector.multi_reduction <add>, %40, %cst_44 [0] : vector<2x16x128xf32> to vector<16x128xf32>
      %cst_45 = arith.constant dense<0.000000e+00> : vector<128xf32>
      %84 = vector.multi_reduction <add>, %83, %cst_45 [0] : vector<16x128xf32> to vector<128xf32>
      %85 = vector.shape_cast %84 : vector<128xf32> to vector<1x128xf32>
      %86 = arith.addf %82, %85 : vector<1x128xf32>
      %c0_46 = arith.constant 0 : index
      %c0_47 = arith.constant 0 : index
      %87 = vector.load %arg13[%c0_46, %c0_47] : memref<1x128xf32, #tpu.memory_space<vmem>>, vector<1x128xf32>
      tpu.vector_store %arg13[%c0_46, %c0_47], %86 {strides = array<i32>} : memref<1x128xf32, #tpu.memory_space<vmem>>, vector<1x128xf32>,
    } else {
    }
    %c0_i32_4 = arith.constant 0 : i32
    %8 = arith.cmpi eq, %arg1, %c0_i32_4 : i32
    %c1_i32 = arith.constant 1 : i32
    %9 = arith.cmpi eq, %arg0, %c1_i32 : i32
    %10 = arith.andi %8, %9 : i1
    %11 = arith.extui %10 : i1 to i32
    %c0_i32_5 = arith.constant 0 : i32
    %12 = arith.cmpi ne, %11, %c0_i32_5 : i32
    scf.if %12 {
      %c0_17 = arith.constant 0 : index
      %c0_18 = arith.constant 0 : index
      %39 = vector.load %arg13[%c0_17, %c0_18] : memref<1x128xf32, #tpu.memory_space<vmem>>, vector<1x128xf32>
      %cst_19 = arith.constant 1.562500e-02 : f32
      %40 = vector.broadcast %cst_19 : f32 to vector<1x128xf32>
      %41 = arith.mulf %39, %40 : vector<1x128xf32>
      %c0_20 = arith.constant 0 : index
      %c0_21 = arith.constant 0 : index
      %42 = vector.load %arg5[%c0_20, %c0_21] : memref<1x128xf32, #tpu.memory_space<vmem>>, vector<1x128xf32>
      %cst_22 = arith.constant 0.899999976 : f32
      %43 = vector.broadcast %cst_22 : f32 to vector<1x128xf32>
      %44 = arith.mulf %42, %43 : vector<1x128xf32>
      %cst_23 = arith.constant 1.000000e-01 : f32
      %45 = vector.broadcast %cst_23 : f32 to vector<1x128xf32>
      %46 = arith.mulf %41, %45 : vector<1x128xf32>
      %47 = arith.addf %44, %46 : vector<1x128xf32>
      %c0_24 = arith.constant 0 : index
      %c0_25 = arith.constant 0 : index
      %48 = vector.load %arg7[%c0_24, %c0_25] : memref<1x128xf32, #tpu.memory_space<vmem>>, vector<1x128xf32>
      tpu.vector_store %arg7[%c0_24, %c0_25], %47 {strides = array<i32>} : memref<1x128xf32, #tpu.memory_space<vmem>>, vector<1x128xf32>,
    } else {
    }
    %c0 = arith.constant 0 : index
    %c0_6 = arith.constant 0 : index
    %c0_7 = arith.constant 0 : index
    %13 = vector.load %arg4[%c0, %c0_6, %c0_7] : memref<1x16x128xf32, #tpu.memory_space<vmem>>, vector<1x16x128xf32>
    %14 = vector.shape_cast %13 : vector<1x16x128xf32> to vector<16x128xf32>
    %cst = arith.constant 1.000000e+01 : f32
    %15 = vector.broadcast %cst : f32 to vector<16x128xf32>
    %16 = arith.mulf %14, %15 : vector<16x128xf32>
    %cst_8 = arith.constant dense<0xFF800000> : vector<16xf32>
    %17 = vector.multi_reduction <maximumf>, %16, %cst_8 [1] : vector<16x128xf32> to vector<16xf32>
    %18 = vector.shape_cast %17 : vector<16xf32> to vector<16x1xf32>
    %19 = vector.broadcast %18 : vector<16x1xf32> to vector<16x128xf32>
    %20 = arith.subf %16, %19 : vector<16x128xf32>
    %21 = math.exp %20 : vector<16x128xf32>
    %cst_9 = arith.constant dense<0.000000e+00> : vector<16xf32>
    %22 = vector.multi_reduction <add>, %21, %cst_9 [1] : vector<16x128xf32> to vector<16xf32>
    %23 = vector.shape_cast %22 : vector<16xf32> to vector<16x1xf32>
    %24 = math.log %23 : vector<16x1xf32>
    %25 = arith.addf %18, %24 : vector<16x1xf32>
    %c0_10 = arith.constant 0 : index
    %c0_11 = arith.constant 0 : index
    %26 = vector.load %arg9[%c0_10, %c0_11] : memref<16x128xbf16, #tpu.memory_space<vmem>>, vector<16x128xbf16>
    %27 = arith.extf %26 : vector<16x128xbf16> to vector<16x128xf32>
    %c2_i32 = arith.constant 2 : i32
    %28 = arith.cmpi slt, %arg1, %c2_i32 : i32
    %29 = arith.extui %28 : i1 to i32
    %c0_i32_12 = arith.constant 0 : i32
    %30 = arith.cmpi ne, %29, %c0_i32_12 : i32
    scf.if %30 {
      %39 = arith.index_cast %arg1 : i32 to index
      %c0_17 = arith.constant 0 : index
      %c0_18 = arith.constant 0 : index
      %40 = vector.load %arg8[%39, %c0_17, %c0_18] : memref<2x16x128xbf16, #tpu.memory_space<vmem>>, vector<1x16x128xbf16>
      %41 = vector.shape_cast %40 : vector<1x16x128xbf16> to vector<16x128xbf16>
      %42 = arith.extf %41 : vector<16x128xbf16> to vector<16x128xf32>
      %43 = arith.subf %27, %42 : vector<16x128xf32>
      %c0_19 = arith.constant 0 : index
      %c0_20 = arith.constant 0 : index
      %44 = vector.load %arg11[%c0_19, %c0_20] : memref<16x128xf32, #tpu.memory_space<vmem>>, vector<16x128xf32>
      %45 = arith.mulf %43, %16 : vector<16x128xf32>
      %46 = arith.addf %44, %45 : vector<16x128xf32>
      %c0_21 = arith.constant 0 : index
      %c0_22 = arith.constant 0 : index
      %47 = vector.load %arg11[%c0_21, %c0_22] : memref<16x128xf32, #tpu.memory_space<vmem>>, vector<16x128xf32>
      tpu.vector_store %arg11[%c0_21, %c0_22], %46 {strides = array<i32>} : memref<16x128xf32, #tpu.memory_space<vmem>>, vector<16x128xf32>,
      %c0_23 = arith.constant 0 : index
      %c0_24 = arith.constant 0 : index
      %48 = vector.load %arg12[%c0_23, %c0_24] : memref<16x1xf32, #tpu.memory_space<vmem>>, vector<16x1xf32>
      %c2 = arith.constant 2 : index
      %c0_25 = arith.constant 0 : index
      %c0_26 = arith.constant 0 : index
      %49 = vector.load %arg10[%c2, %c0_25, %c0_26] : memref<3x16x1xf32, #tpu.memory_space<vmem>>, vector<1x16x1xf32>
      %50 = vector.shape_cast %49 : vector<1x16x1xf32> to vector<16x1xf32>
      %51 = arith.index_cast %arg1 : i32 to index
      %c0_27 = arith.constant 0 : index
      %c0_28 = arith.constant 0 : index
      %52 = vector.load %arg10[%51, %c0_27, %c0_28] : memref<3x16x1xf32, #tpu.memory_space<vmem>>, vector<1x16x1xf32>
      %53 = vector.shape_cast %52 : vector<1x16x1xf32> to vector<16x1xf32>
      %54 = arith.subf %50, %53 : vector<16x1xf32>
      %55 = arith.mulf %54, %25 : vector<16x1xf32>
      %56 = arith.addf %48, %55 : vector<16x1xf32>
      %c0_29 = arith.constant 0 : index
      %c0_30 = arith.constant 0 : index
      %57 = vector.load %arg12[%c0_29, %c0_30] : memref<16x1xf32, #tpu.memory_space<vmem>>, vector<16x1xf32>
      tpu.vector_store %arg12[%c0_29, %c0_30], %56 {strides = array<i32>} : memref<16x1xf32, #tpu.memory_space<vmem>>, vector<16x1xf32>,
    } else {
    }
    %c2_i32_13 = arith.constant 2 : i32
    %31 = arith.cmpi sge, %arg1, %c2_i32_13 : i32
    %32 = arith.extui %31 : i1 to i32
    %c0_i32_14 = arith.constant 0 : i32
    %33 = arith.cmpi ne, %32, %c0_i32_14 : i32
    scf.if %33 {
      %c0_17 = arith.constant 0 : index
      %c0_18 = arith.constant 0 : index
      %39 = vector.load %arg11[%c0_17, %c0_18] : memref<16x128xf32, #tpu.memory_space<vmem>>, vector<16x128xf32>
      %40 = arith.mulf %27, %16 : vector<16x128xf32>
      %41 = arith.addf %39, %40 : vector<16x128xf32>
      %c0_19 = arith.constant 0 : index
      %c0_20 = arith.constant 0 : index
      %42 = vector.load %arg11[%c0_19, %c0_20] : memref<16x128xf32, #tpu.memory_space<vmem>>, vector<16x128xf32>
      tpu.vector_store %arg11[%c0_19, %c0_20], %41 {strides = array<i32>} : memref<16x128xf32, #tpu.memory_space<vmem>>, vector<16x128xf32>,
      %c0_21 = arith.constant 0 : index
      %c0_22 = arith.constant 0 : index
      %43 = vector.load %arg12[%c0_21, %c0_22] : memref<16x1xf32, #tpu.memory_space<vmem>>, vector<16x1xf32>
      %c2 = arith.constant 2 : index
      %c0_23 = arith.constant 0 : index
      %c0_24 = arith.constant 0 : index
      %44 = vector.load %arg10[%c2, %c0_23, %c0_24] : memref<3x16x1xf32, #tpu.memory_space<vmem>>, vector<1x16x1xf32>
      %45 = vector.shape_cast %44 : vector<1x16x1xf32> to vector<16x1xf32>
      %46 = arith.mulf %45, %25 : vector<16x1xf32>
      %47 = arith.addf %43, %46 : vector<16x1xf32>
      %c0_25 = arith.constant 0 : index
      %c0_26 = arith.constant 0 : index
      %48 = vector.load %arg12[%c0_25, %c0_26] : memref<16x1xf32, #tpu.memory_space<vmem>>, vector<16x1xf32>
      tpu.vector_store %arg12[%c0_25, %c0_26], %47 {strides = array<i32>} : memref<16x1xf32, #tpu.memory_space<vmem>>, vector<16x1xf32>,
    } else {
    }
    %c1_i32_15 = arith.constant 1 : i32
    %34 = arith.cmpi eq, %arg0, %c1_i32_15 : i32
    %c3_i32 = arith.constant 3 : i32
    %35 = arith.cmpi eq, %arg1, %c3_i32 : i32
    %36 = arith.andi %34, %35 : i1
    %37 = arith.extui %36 : i1 to i32
    %c0_i32_16 = arith.constant 0 : i32
    %38 = arith.cmpi ne, %37, %c0_i32_16 : i32
    scf.if %38 {
      %c0_17 = arith.constant 0 : index
      %c0_18 = arith.constant 0 : index
      %39 = vector.load %arg12[%c0_17, %c0_18] : memref<16x1xf32, #tpu.memory_space<vmem>>, vector<16x1xf32>
      %40 = vector.shape_cast %39 : vector<16x1xf32> to vector<1x16x1xf32>
      %cst_19 = arith.constant dense<0.000000e+00> : vector<1xf32>
      %41 = vector.multi_reduction <add>, %40, %cst_19 [1, 2] : vector<1x16x1xf32> to vector<1xf32>
      %42 = vector.shape_cast %41 : vector<1xf32> to vector<1x1x1xf32>
      %43 = vector.extract %42[0, 0, 0] : f32 from vector<1x1x1xf32>
      %c0_20 = arith.constant 0 : index
      %c0_21 = arith.constant 0 : index
      %44 = vector.load %arg11[%c0_20, %c0_21] : memref<16x128xf32, #tpu.memory_space<vmem>>, vector<16x128xf32>
      %45 = vector.shape_cast %44 : vector<16x128xf32> to vector<1x16x128xf32>
      %cst_22 = arith.constant dense<0.000000e+00> : vector<1xf32>
      %46 = vector.multi_reduction <add>, %45, %cst_22 [1, 2] : vector<1x16x128xf32> to vector<1xf32>
      %47 = vector.shape_cast %46 : vector<1xf32> to vector<1x1x1xf32>
      %48 = vector.extract %47[0, 0, 0] : f32 from vector<1x1x1xf32>
      %49 = arith.subf %43, %48 : f32
      %cst_23 = arith.constant 0.00520833349 : f32
      %50 = arith.mulf %49, %cst_23 : f32
      %c0_24 = arith.constant 0 : index
      %c0_25 = arith.constant 0 : index
      %51 = memref.load %arg6[%c0_24, %c0_25] : memref<1x1xf32, #tpu.memory_space<smem>>
      memref.store %50, %arg6[%c0_24, %c0_25] : memref<1x1xf32, #tpu.memory_space<smem>>
    } else {
    }
    return
  }
  func.func @transform_0(%arg0: i32, %arg1: i32) -> (i32, i32) {
    %c0_i32 = arith.constant 0 : i32
    %c0_i32_0 = arith.constant 0 : i32
    %c0_i32_1 = arith.constant 0 : i32
    return %c0_i32, %c0_i32_0 : i32, i32
  }
  func.func @transform_1(%arg0: i32, %arg1: i32) -> (i32, i32, i32) {
    %c0_i32 = arith.constant 0 : i32
    %c0_i32_0 = arith.constant 0 : i32
    %c0_i32_1 = arith.constant 0 : i32
    return %c0_i32, %arg0, %c0_i32_0 : i32, i32, i32
  }
  func.func @transform_2(%arg0: i32, %arg1: i32) -> (i32, i32, i32) {
    %c0_i32 = arith.constant 0 : i32
    %c0_i32_0 = arith.constant 0 : i32
    return %arg1, %arg0, %c0_i32 : i32, i32, i32
  }
  func.func @transform_3(%arg0: i32, %arg1: i32) -> (i32, i32) {
    %c0_i32 = arith.constant 0 : i32
    %c0_i32_0 = arith.constant 0 : i32
    %c0_i32_1 = arith.constant 0 : i32
    return %c0_i32, %c0_i32_0 : i32, i32
  }
  func.func @transform_4(%arg0: i32, %arg1: i32) -> (i32, i32) {
    %c0_i32 = arith.constant 0 : i32
    %c0_i32_0 = arith.constant 0 : i32
    %c0_i32_1 = arith.constant 0 : i32
    return %c0_i32, %c0_i32_0 : i32, i32
  }
  func.func @transform_5(%arg0: i32, %arg1: i32) -> (i32, i32) {
    %c0_i32 = arith.constant 0 : i32
    %c0_i32_0 = arith.constant 0 : i32
    %c0_i32_1 = arith.constant 0 : i32
    return %c0_i32, %c0_i32_0 : i32, i32
  }
}

module attributes {stable_mosaic.version = 11 : i64} {
  func.func @kernel(%arg0: i32, %arg1: i32, %arg2: memref<1x1xf32, #tpu.memory_space<smem>>, %arg3: memref<2x16x128xf32, #tpu.memory_space<vmem>>, %arg4: memref<1x16x128xf32, #tpu.memory_space<vmem>>, %arg5: memref<1x128xf32, #tpu.memory_space<vmem>>, %arg6: memref<1x1xf32, #tpu.memory_space<smem>>, %arg7: memref<1x128xf32, #tpu.memory_space<vmem>>, %arg8: memref<2x16x128xbf16, #tpu.memory_space<vmem>>, %arg9: memref<16x128xbf16, #tpu.memory_space<vmem>>, %arg10: memref<3x16x1xf32, #tpu.memory_space<vmem>>, %arg11: memref<16x128xf32, #tpu.memory_space<vmem>>, %arg12: memref<16x1xf32, #tpu.memory_space<vmem>>, %arg13: memref<1x128xf32, #tpu.memory_space<vmem>>) attributes {dimension_semantics = [#tpu.dimension_semantics<arbitrary>, #tpu.dimension_semantics<arbitrary>], iteration_bounds = array<i64: 2, 4>, scalar_prefetch = 0 : i64, scratch_operands = 6 : i64, tpu.core_type = #tpu.core_type<tc>, window_params = [{transform_indices = @transform_0, window_bounds = array<i64: 1, 1>}, {transform_indices = @transform_1, window_bounds = array<i64: 2, 16, 128>}, {transform_indices = @transform_2, window_bounds = array<i64: 1, 16, 128>}, {pipeline_mode = #tpu.pipeline_mode<synchronous>, transform_indices = @transform_3, window_bounds = array<i64: 1, 128>}, {transform_indices = @transform_4, window_bounds = array<i64: 1, 1>}, {pipeline_mode = #tpu.pipeline_mode<synchronous>, transform_indices = @transform_5, window_bounds = array<i64: 1, 128>}]} {
    %c0_i32 = arith.constant 0 : i32
    %0 = arith.cmpi eq, %arg0, %c0_i32 : i32
    %c0_i32_0 = arith.constant 0 : i32
    %1 = arith.cmpi eq, %arg1, %c0_i32_0 : i32
    %2 = arith.andi %0, %1 : i1
    %3 = arith.extui %2 : i1 to i32
    %c0_i32_1 = arith.constant 0 : i32
    %4 = arith.cmpi ne, %3, %c0_i32_1 : i32
    scf.if %4 {
      %cst_17 = arith.constant 0.000000e+00 : f32
      %39 = vector.broadcast %cst_17 : f32 to vector<16x128xf32>
      %c0_18 = arith.constant 0 : index
      %c0_19 = arith.constant 0 : index
      %40 = vector.load %arg11[%c0_18, %c0_19] : memref<16x128xf32, #tpu.memory_space<vmem>>, vector<16x128xf32>
      tpu.vector_store %arg11[%c0_18, %c0_19], %39 {strides = array<i32>} : memref<16x128xf32, #tpu.memory_space<vmem>>, vector<16x128xf32>,
      %cst_20 = arith.constant 0.000000e+00 : f32
      %41 = vector.broadcast %cst_20 : f32 to vector<16x1xf32>
      %c0_21 = arith.constant 0 : index
      %c0_22 = arith.constant 0 : index
      %42 = vector.load %arg12[%c0_21, %c0_22] : memref<16x1xf32, #tpu.memory_space<vmem>>, vector<16x1xf32>
      tpu.vector_store %arg12[%c0_21, %c0_22], %41 {strides = array<i32>} : memref<16x1xf32, #tpu.memory_space<vmem>>, vector<16x1xf32>,
      %cst_23 = arith.constant 0.000000e+00 : f32
      %43 = vector.broadcast %cst_23 : f32 to vector<1x128xf32>
      %c0_24 = arith.constant 0 : index
      %c0_25 = arith.constant 0 : index
      %44 = vector.load %arg13[%c0_24, %c0_25] : memref<1x128xf32, #tpu.memory_space<vmem>>, vector<1x128xf32>
      tpu.vector_store %arg13[%c0_24, %c0_25], %43 {strides = array<i32>} : memref<1x128xf32, #tpu.memory_space<vmem>>, vector<1x128xf32>,
    } else {
    }
    %c0_i32_2 = arith.constant 0 : i32
    %5 = arith.cmpi eq, %arg1, %c0_i32_2 : i32
    %6 = arith.extui %5 : i1 to i32
    %c0_i32_3 = arith.constant 0 : i32
    %7 = arith.cmpi ne, %6, %c0_i32_3 : i32
    scf.if %7 {
      %c0_17 = arith.constant 0 : index
      %c0_18 = arith.constant 0 : index
      %39 = memref.load %arg2[%c0_17, %c0_18] : memref<1x1xf32, #tpu.memory_space<smem>>
      %c0_19 = arith.constant 0 : index
      %c0_20 = arith.constant 0 : index
      %c0_21 = arith.constant 0 : index
      %40 = vector.load %arg3[%c0_19, %c0_20, %c0_21] : memref<2x16x128xf32, #tpu.memory_space<vmem>>, vector<2x16x128xf32>
      %c0_22 = arith.constant 0 : index
      %c0_23 = arith.constant 0 : index
      %41 = vector.load %arg5[%c0_22, %c0_23] : memref<1x128xf32, #tpu.memory_space<vmem>>, vector<1x128xf32>
      %42 = vector.shape_cast %41 : vector<1x128xf32> to vector<1x1x128xf32>
      %43 = vector.broadcast %42 : vector<1x1x128xf32> to vector<2x16x128xf32>
      %44 = arith.subf %40, %43 : vector<2x16x128xf32>
      %45 = vector.broadcast %39 : f32 to vector<2x16x128xf32>
      %46 = arith.mulf %44, %45 : vector<2x16x128xf32>
      %cst_24 = arith.constant dense<0xFF800000> : vector<2x16xf32>
      %47 = vector.multi_reduction <maximumf>, %46, %cst_24 [2] : vector<2x16x128xf32> to vector<2x16xf32>
      %48 = vector.shape_cast %47 : vector<2x16xf32> to vector<2x16x1xf32>
      %49 = vector.broadcast %48 : vector<2x16x1xf32> to vector<2x16x128xf32>
      %50 = arith.subf %46, %49 : vector<2x16x128xf32>
      %51 = math.exp %50 : vector<2x16x128xf32>
      %cst_25 = arith.constant dense<0.000000e+00> : vector<2x16xf32>
      %52 = vector.multi_reduction <add>, %51, %cst_25 [2] : vector<2x16x128xf32> to vector<2x16xf32>
      %53 = vector.shape_cast %52 : vector<2x16xf32> to vector<2x16x1xf32>
      %54 = vector.broadcast %53 : vector<2x16x1xf32> to vector<2x16x128xf32>
      %55 = arith.divf %51, %54 : vector<2x16x128xf32>
      %56 = arith.truncf %55 : vector<2x16x128xf32> to vector<2x16x128xbf16>
      %c0_26 = arith.constant 0 : index
      %c0_27 = arith.constant 0 : index
      %c0_28 = arith.constant 0 : index
      %57 = vector.load %arg8[%c0_26, %c0_27, %c0_28] : memref<2x16x128xbf16, #tpu.memory_space<vmem>>, vector<2x16x128xbf16>
      tpu.vector_store %arg8[%c0_26, %c0_27, %c0_28], %56 {strides = array<i32>} : memref<2x16x128xbf16, #tpu.memory_space<vmem>>, vector<2x16x128xbf16>,
      %58 = arith.extf %56 : vector<2x16x128xbf16> to vector<2x16x128xf32>
      %cst_29 = arith.constant dense<0.000000e+00> : vector<16x128xf32>
      %59 = vector.multi_reduction <add>, %58, %cst_29 [0] : vector<2x16x128xf32> to vector<16x128xf32>
      %60 = arith.truncf %59 : vector<16x128xf32> to vector<16x128xbf16>
      %c0_30 = arith.constant 0 : index
      %c0_31 = arith.constant 0 : index
      %61 = vector.load %arg9[%c0_30, %c0_31] : memref<16x128xbf16, #tpu.memory_space<vmem>>, vector<16x128xbf16>
      tpu.vector_store %arg9[%c0_30, %c0_31], %60 {strides = array<i32>} : memref<16x128xbf16, #tpu.memory_space<vmem>>, vector<16x128xbf16>,
      %62 = arith.extf %60 : vector<16x128xbf16> to vector<16x128xf32>
      %cst_32 = arith.constant dense<0.000000e+00> : vector<16xf32>
      %63 = vector.multi_reduction <add>, %62, %cst_32 [1] : vector<16x128xf32> to vector<16xf32>
      %64 = vector.shape_cast %63 : vector<16xf32> to vector<16x1xf32>
      %c2 = arith.constant 2 : index
      %c0_33 = arith.constant 0 : index
      %c0_34 = arith.constant 0 : index
      %65 = vector.load %arg10[%c2, %c0_33, %c0_34] : memref<3x16x1xf32, #tpu.memory_space<vmem>>, vector<1x16x1xf32>
      %66 = vector.shape_cast %65 : vector<1x16x1xf32> to vector<16x1xf32>
      %67 = vector.shape_cast %64 : vector<16x1xf32> to vector<1x16x1xf32>
      tpu.vector_store %arg10[%c2, %c0_33, %c0_34], %67 {strides = array<i32>} : memref<3x16x1xf32, #tpu.memory_space<vmem>>, vector<1x16x1xf32>,
      %68 = vector.extract_strided_slice %58 {offsets = [0, 0, 0], sizes = [1, 16, 128], strides = [1, 1, 1]} : vector<2x16x128xf32> to vector<1x16x128xf32>
      %69 = vector.shape_cast %68 : vector<1x16x128xf32> to vector<16x128xf32>
      %cst_35 = arith.constant dense<0.000000e+00> : vector<16xf32>
      %70 = vector.multi_reduction <add>, %69, %cst_35 [1] : vector<16x128xf32> to vector<16xf32>
      %71 = vector.shape_cast %70 : vector<16xf32> to vector<16x1xf32>
      %c0_36 = arith.constant 0 : index
      %c0_37 = arith.constant 0 : index
      %c0_38 = arith.constant 0 : index
      %72 = vector.load %arg10[%c0_36, %c0_37, %c0_38] : memref<3x16x1xf32, #tpu.memory_space<vmem>>, vector<1x16x1xf32>
      %73 = vector.shape_cast %72 : vector<1x16x1xf32> to vector<16x1xf32>
      %74 = vector.shape_cast %71 : vector<16x1xf32> to vector<1x16x1xf32>
      tpu.vector_store %arg10[%c0_36, %c0_37, %c0_38], %74 {strides = array<i32>} : memref<3x16x1xf32, #tpu.memory_space<vmem>>, vector<1x16x1xf32>,
      %75 = vector.extract_strided_slice %58 {offsets = [1, 0, 0], sizes = [1, 16, 128], strides = [1, 1, 1]} : vector<2x16x128xf32> to vector<1x16x128xf32>
      %76 = vector.shape_cast %75 : vector<1x16x128xf32> to vector<16x128xf32>
      %cst_39 = arith.constant dense<0.000000e+00> : vector<16xf32>
      %77 = vector.multi_reduction <add>, %76, %cst_39 [1] : vector<16x128xf32> to vector<16xf32>
      %78 = vector.shape_cast %77 : vector<16xf32> to vector<16x1xf32>
      %c1 = arith.constant 1 : index
      %c0_40 = arith.constant 0 : index
      %c0_41 = arith.constant 0 : index
      %79 = vector.load %arg10[%c1, %c0_40, %c0_41] : memref<3x16x1xf32, #tpu.memory_space<vmem>>, vector<1x16x1xf32>
      %80 = vector.shape_cast %79 : vector<1x16x1xf32> to vector<16x1xf32>
      %81 = vector.shape_cast %78 : vector<16x1xf32> to vector<1x16x1xf32>
      tpu.vector_store %arg10[%c1, %c0_40, %c0_41], %81 {strides = array<i32>} : memref<3x16x1xf32, #tpu.memory_space<vmem>>, vector<1x16x1xf32>,
      %c0_42 = arith.constant 0 : index
      %c0_43 = arith.constant 0 : index
      %82 = vector.load %arg13[%c0_42, %c0_43] : memref<1x128xf32, #tpu.memory_space<vmem>>, vector<1x128xf32>
      %cst_44 = arith.constant dense<0.000000e+00> : vector<16x128xf32>
      %83 = vector.multi_reduction <add>, %40, %cst_44 [0] : vector<2x16x128xf32> to vector<16x128xf32>
      %cst_45 = arith.constant dense<0.000000e+00> : vector<128xf32>
      %84 = vector.multi_reduction <add>, %83, %cst_45 [0] : vector<16x128xf32> to vector<128xf32>
      %85 = vector.shape_cast %84 : vector<128xf32> to vector<1x128xf32>
      %86 = arith.addf %82, %85 : vector<1x128xf32>
      %c0_46 = arith.constant 0 : index
      %c0_47 = arith.constant 0 : index
      %87 = vector.load %arg13[%c0_46, %c0_47] : memref<1x128xf32, #tpu.memory_space<vmem>>, vector<1x128xf32>
      tpu.vector_store %arg13[%c0_46, %c0_47], %86 {strides = array<i32>} : memref<1x128xf32, #tpu.memory_space<vmem>>, vector<1x128xf32>,
    } else {
    }
    %c0_i32_4 = arith.constant 0 : i32
    %8 = arith.cmpi eq, %arg1, %c0_i32_4 : i32
    %c1_i32 = arith.constant 1 : i32
    %9 = arith.cmpi eq, %arg0, %c1_i32 : i32
    %10 = arith.andi %8, %9 : i1
    %11 = arith.extui %10 : i1 to i32
    %c0_i32_5 = arith.constant 0 : i32
    %12 = arith.cmpi ne, %11, %c0_i32_5 : i32
    scf.if %12 {
      %c0_17 = arith.constant 0 : index
      %c0_18 = arith.constant 0 : index
      %39 = vector.load %arg13[%c0_17, %c0_18] : memref<1x128xf32, #tpu.memory_space<vmem>>, vector<1x128xf32>
      %cst_19 = arith.constant 1.562500e-02 : f32
      %40 = vector.broadcast %cst_19 : f32 to vector<1x128xf32>
      %41 = arith.mulf %39, %40 : vector<1x128xf32>
      %c0_20 = arith.constant 0 : index
      %c0_21 = arith.constant 0 : index
      %42 = vector.load %arg5[%c0_20, %c0_21] : memref<1x128xf32, #tpu.memory_space<vmem>>, vector<1x128xf32>
      %cst_22 = arith.constant 0.899999976 : f32
      %43 = vector.broadcast %cst_22 : f32 to vector<1x128xf32>
      %44 = arith.mulf %42, %43 : vector<1x128xf32>
      %cst_23 = arith.constant 1.000000e-01 : f32
      %45 = vector.broadcast %cst_23 : f32 to vector<1x128xf32>
      %46 = arith.mulf %41, %45 : vector<1x128xf32>
      %47 = arith.addf %44, %46 : vector<1x128xf32>
      %c0_24 = arith.constant 0 : index
      %c0_25 = arith.constant 0 : index
      %48 = vector.load %arg7[%c0_24, %c0_25] : memref<1x128xf32, #tpu.memory_space<vmem>>, vector<1x128xf32>
      tpu.vector_store %arg7[%c0_24, %c0_25], %47 {strides = array<i32>} : memref<1x128xf32, #tpu.memory_space<vmem>>, vector<1x128xf32>,
    } else {
    }
    %c0 = arith.constant 0 : index
    %c0_6 = arith.constant 0 : index
    %c0_7 = arith.constant 0 : index
    %13 = vector.load %arg4[%c0, %c0_6, %c0_7] : memref<1x16x128xf32, #tpu.memory_space<vmem>>, vector<1x16x128xf32>
    %14 = vector.shape_cast %13 : vector<1x16x128xf32> to vector<16x128xf32>
    %cst = arith.constant 1.000000e+01 : f32
    %15 = vector.broadcast %cst : f32 to vector<16x128xf32>
    %16 = arith.mulf %14, %15 : vector<16x128xf32>
    %cst_8 = arith.constant dense<0xFF800000> : vector<16xf32>
    %17 = vector.multi_reduction <maximumf>, %16, %cst_8 [1] : vector<16x128xf32> to vector<16xf32>
    %18 = vector.shape_cast %17 : vector<16xf32> to vector<16x1xf32>
    %19 = vector.broadcast %18 : vector<16x1xf32> to vector<16x128xf32>
    %20 = arith.subf %16, %19 : vector<16x128xf32>
    %21 = math.exp %20 : vector<16x128xf32>
    %cst_9 = arith.constant dense<0.000000e+00> : vector<16xf32>
    %22 = vector.multi_reduction <add>, %21, %cst_9 [1] : vector<16x128xf32> to vector<16xf32>
    %23 = vector.shape_cast %22 : vector<16xf32> to vector<16x1xf32>
    %24 = math.log %23 : vector<16x1xf32>
    %25 = arith.addf %18, %24 : vector<16x1xf32>
    %c0_10 = arith.constant 0 : index
    %c0_11 = arith.constant 0 : index
    %26 = vector.load %arg9[%c0_10, %c0_11] : memref<16x128xbf16, #tpu.memory_space<vmem>>, vector<16x128xbf16>
    %27 = arith.extf %26 : vector<16x128xbf16> to vector<16x128xf32>
    %c2_i32 = arith.constant 2 : i32
    %28 = arith.cmpi slt, %arg1, %c2_i32 : i32
    %29 = arith.extui %28 : i1 to i32
    %c0_i32_12 = arith.constant 0 : i32
    %30 = arith.cmpi ne, %29, %c0_i32_12 : i32
    scf.if %30 {
      %39 = arith.index_cast %arg1 : i32 to index
      %c0_17 = arith.constant 0 : index
      %c0_18 = arith.constant 0 : index
      %40 = vector.load %arg8[%39, %c0_17, %c0_18] : memref<2x16x128xbf16, #tpu.memory_space<vmem>>, vector<1x16x128xbf16>
      %41 = vector.shape_cast %40 : vector<1x16x128xbf16> to vector<16x128xbf16>
      %42 = arith.extf %41 : vector<16x128xbf16> to vector<16x128xf32>
      %43 = arith.subf %27, %42 : vector<16x128xf32>
      %c0_19 = arith.constant 0 : index
      %c0_20 = arith.constant 0 : index
      %44 = vector.load %arg11[%c0_19, %c0_20] : memref<16x128xf32, #tpu.memory_space<vmem>>, vector<16x128xf32>
      %45 = arith.mulf %43, %16 : vector<16x128xf32>
      %46 = arith.addf %44, %45 : vector<16x128xf32>
      %c0_21 = arith.constant 0 : index
      %c0_22 = arith.constant 0 : index
      %47 = vector.load %arg11[%c0_21, %c0_22] : memref<16x128xf32, #tpu.memory_space<vmem>>, vector<16x128xf32>
      tpu.vector_store %arg11[%c0_21, %c0_22], %46 {strides = array<i32>} : memref<16x128xf32, #tpu.memory_space<vmem>>, vector<16x128xf32>,
      %c0_23 = arith.constant 0 : index
      %c0_24 = arith.constant 0 : index
      %48 = vector.load %arg12[%c0_23, %c0_24] : memref<16x1xf32, #tpu.memory_space<vmem>>, vector<16x1xf32>
      %c2 = arith.constant 2 : index
      %c0_25 = arith.constant 0 : index
      %c0_26 = arith.constant 0 : index
      %49 = vector.load %arg10[%c2, %c0_25, %c0_26] : memref<3x16x1xf32, #tpu.memory_space<vmem>>, vector<1x16x1xf32>
      %50 = vector.shape_cast %49 : vector<1x16x1xf32> to vector<16x1xf32>
      %51 = arith.index_cast %arg1 : i32 to index
      %c0_27 = arith.constant 0 : index
      %c0_28 = arith.constant 0 : index
      %52 = vector.load %arg10[%51, %c0_27, %c0_28] : memref<3x16x1xf32, #tpu.memory_space<vmem>>, vector<1x16x1xf32>
      %53 = vector.shape_cast %52 : vector<1x16x1xf32> to vector<16x1xf32>
      %54 = arith.subf %50, %53 : vector<16x1xf32>
      %55 = arith.mulf %54, %25 : vector<16x1xf32>
      %56 = arith.addf %48, %55 : vector<16x1xf32>
      %c0_29 = arith.constant 0 : index
      %c0_30 = arith.constant 0 : index
      %57 = vector.load %arg12[%c0_29, %c0_30] : memref<16x1xf32, #tpu.memory_space<vmem>>, vector<16x1xf32>
      tpu.vector_store %arg12[%c0_29, %c0_30], %56 {strides = array<i32>} : memref<16x1xf32, #tpu.memory_space<vmem>>, vector<16x1xf32>,
    } else {
    }
    %c2_i32_13 = arith.constant 2 : i32
    %31 = arith.cmpi sge, %arg1, %c2_i32_13 : i32
    %32 = arith.extui %31 : i1 to i32
    %c0_i32_14 = arith.constant 0 : i32
    %33 = arith.cmpi ne, %32, %c0_i32_14 : i32
    scf.if %33 {
      %c0_17 = arith.constant 0 : index
      %c0_18 = arith.constant 0 : index
      %39 = vector.load %arg11[%c0_17, %c0_18] : memref<16x128xf32, #tpu.memory_space<vmem>>, vector<16x128xf32>
      %40 = arith.mulf %27, %16 : vector<16x128xf32>
      %41 = arith.addf %39, %40 : vector<16x128xf32>
      %c0_19 = arith.constant 0 : index
      %c0_20 = arith.constant 0 : index
      %42 = vector.load %arg11[%c0_19, %c0_20] : memref<16x128xf32, #tpu.memory_space<vmem>>, vector<16x128xf32>
      tpu.vector_store %arg11[%c0_19, %c0_20], %41 {strides = array<i32>} : memref<16x128xf32, #tpu.memory_space<vmem>>, vector<16x128xf32>,
      %c0_21 = arith.constant 0 : index
      %c0_22 = arith.constant 0 : index
      %43 = vector.load %arg12[%c0_21, %c0_22] : memref<16x1xf32, #tpu.memory_space<vmem>>, vector<16x1xf32>
      %c2 = arith.constant 2 : index
      %c0_23 = arith.constant 0 : index
      %c0_24 = arith.constant 0 : index
      %44 = vector.load %arg10[%c2, %c0_23, %c0_24] : memref<3x16x1xf32, #tpu.memory_space<vmem>>, vector<1x16x1xf32>
      %45 = vector.shape_cast %44 : vector<1x16x1xf32> to vector<16x1xf32>
      %46 = arith.mulf %45, %25 : vector<16x1xf32>
      %47 = arith.addf %43, %46 : vector<16x1xf32>
      %c0_25 = arith.constant 0 : index
      %c0_26 = arith.constant 0 : index
      %48 = vector.load %arg12[%c0_25, %c0_26] : memref<16x1xf32, #tpu.memory_space<vmem>>, vector<16x1xf32>
      tpu.vector_store %arg12[%c0_25, %c0_26], %47 {strides = array<i32>} : memref<16x1xf32, #tpu.memory_space<vmem>>, vector<16x1xf32>,
    } else {
    }
    %c1_i32_15 = arith.constant 1 : i32
    %34 = arith.cmpi eq, %arg0, %c1_i32_15 : i32
    %c3_i32 = arith.constant 3 : i32
    %35 = arith.cmpi eq, %arg1, %c3_i32 : i32
    %36 = arith.andi %34, %35 : i1
    %37 = arith.extui %36 : i1 to i32
    %c0_i32_16 = arith.constant 0 : i32
    %38 = arith.cmpi ne, %37, %c0_i32_16 : i32
    scf.if %38 {
      %c0_17 = arith.constant 0 : index
      %c0_18 = arith.constant 0 : index
      %39 = vector.load %arg12[%c0_17, %c0_18] : memref<16x1xf32, #tpu.memory_space<vmem>>, vector<16x1xf32>
      %40 = vector.shape_cast %39 : vector<16x1xf32> to vector<1x16x1xf32>
      %cst_19 = arith.constant dense<0.000000e+00> : vector<1xf32>
      %41 = vector.multi_reduction <add>, %40, %cst_19 [1, 2] : vector<1x16x1xf32> to vector<1xf32>
      %42 = vector.shape_cast %41 : vector<1xf32> to vector<1x1x1xf32>
      %43 = vector.extract %42[0, 0, 0] : f32 from vector<1x1x1xf32>
      %c0_20 = arith.constant 0 : index
      %c0_21 = arith.constant 0 : index
      %44 = vector.load %arg11[%c0_20, %c0_21] : memref<16x128xf32, #tpu.memory_space<vmem>>, vector<16x128xf32>
      %45 = vector.shape_cast %44 : vector<16x128xf32> to vector<1x16x128xf32>
      %cst_22 = arith.constant dense<0.000000e+00> : vector<1xf32>
      %46 = vector.multi_reduction <add>, %45, %cst_22 [1, 2] : vector<1x16x128xf32> to vector<1xf32>
      %47 = vector.shape_cast %46 : vector<1xf32> to vector<1x1x1xf32>
      %48 = vector.extract %47[0, 0, 0] : f32 from vector<1x1x1xf32>
      %49 = arith.subf %43, %48 : f32
      %cst_23 = arith.constant 0.00520833349 : f32
      %50 = arith.mulf %49, %cst_23 : f32
      %c0_24 = arith.constant 0 : index
      %c0_25 = arith.constant 0 : index
      %51 = memref.load %arg6[%c0_24, %c0_25] : memref<1x1xf32, #tpu.memory_space<smem>>
      memref.store %50, %arg6[%c0_24, %c0_25] : memref<1x1xf32, #tpu.memory_space<smem>>
    } else {
    }
    return
  }
  func.func @transform_0(%arg0: i32, %arg1: i32) -> (i32, i32) {
    %c0_i32 = arith.constant 0 : i32
    %c0_i32_0 = arith.constant 0 : i32
    %c0_i32_1 = arith.constant 0 : i32
    return %c0_i32, %c0_i32_0 : i32, i32
  }
  func.func @transform_1(%arg0: i32, %arg1: i32) -> (i32, i32, i32) {
    %c0_i32 = arith.constant 0 : i32
    %c0_i32_0 = arith.constant 0 : i32
    %c0_i32_1 = arith.constant 0 : i32
    return %c0_i32, %arg0, %c0_i32_0 : i32, i32, i32
  }
  func.func @transform_2(%arg0: i32, %arg1: i32) -> (i32, i32, i32) {
    %c0_i32 = arith.constant 0 : i32
    %c0_i32_0 = arith.constant 0 : i32
    return %arg1, %arg0, %c0_i32 : i32, i32, i32
  }
  func.func @transform_3(%arg0: i32, %arg1: i32) -> (i32, i32) {
    %c0_i32 = arith.constant 0 : i32
    %c0_i32_0 = arith.constant 0 : i32
    %c0_i32_1 = arith.constant 0 : i32
    return %c0_i32, %c0_i32_0 : i32, i32
  }
  func.func @transform_4(%arg0: i32, %arg1: i32) -> (i32, i32) {
    %c0_i32 = arith.constant 0 : i32
    %c0_i32_0 = arith.constant 0 : i32
    %c0_i32_1 = arith.constant 0 : i32
    return %c0_i32, %c0_i32_0 : i32, i32
  }
  func.func @transform_5(%arg0: i32, %arg1: i32) -> (i32, i32) {
    %c0_i32 = arith.constant 0 : i32
    %c0_i32_0 = arith.constant 0 : i32
    %c0_i32_1 = arith.constant 0 : i32
    return %c0_i32, %c0_i32_0 : i32, i32
  }
}

</mosaic_0001>

<llo_original>
// kernel: _dino_forward.1
$region0: #{_dino_forward.1}
  #allocation0 [shape = 'u32[]', space=smem, size = 0x4, offset = 0x4, fixed_abs, tag = 'smem constant byte address 0x4 - core index']
  #allocation1 [shape = 'u32[72,128]{1,0:T(1,128)}', space=vmem, size = 0x9000, scoped, tag = 'internal scratch']
  #allocation2 [shape = 'bf16[2,16,128]{2,1,0:T(8,128)(2,1)}', space=vmem, size = 0x2000, scoped, tag = 'scratch operand']
  #allocation3 [shape = 'bf16[16,128]{1,0:T(8,128)(2,1)}', space=vmem, size = 0x1000, scoped, tag = 'scratch operand']
  #allocation4 [shape = 'f32[3,16,1]{2,1,0:T(8,128)}', space=vmem, size = 0x6000, scoped, tag = 'scratch operand']
  #allocation5 [shape = 'f32[16,128]{1,0:T(8,128)}', space=vmem, size = 0x2000, scoped, tag = 'scratch operand']
  #allocation6 [shape = 'f32[16,1]{1,0:T(8,128)}', space=vmem, size = 0x2000, scoped, tag = 'scratch operand']
  #allocation7 [shape = 'f32[1,128]{1,0:T(1,128)}', space=vmem, size = 0x200, scoped, tag = 'scratch operand']
  #allocation8 [shape = 'f32[1,1]{1,0:T(1,128)S(6)}', space=smem, size = 0x200, scoped, tag = 'scoped memory for _dino_forward.1']
  #allocation17 [shape = 's32[]', space=sflag, size = 0x4, offset = 0, fixed_abs, tag = 'sflag constant byte address 0x0 - dummy sync flag']
  %s0 = inlined_call_operand.<no memory space> [shape: f32[1,1], index: 0, kind: input, shape index: {}]
  %s1 = inlined_call_operand.hbm [shape: f32[2,32,128], index: 1, kind: input, shape index: {}]
  %s2 = inlined_call_operand.hbm [shape: f32[4,32,128], index: 2, kind: input, shape index: {}]
  %s3 = inlined_call_operand.vmem [shape: f32[1,128], index: 3, kind: input, shape index: {}]
  %s4 = inlined_call_operand.hbm [shape: f32[1,1], index: 4, kind: output, shape index: {0}]
  %s5 = inlined_call_operand.hbm [shape: f32[1,128], index: 5, kind: output, shape index: {1}]
  %6 = xla_tuple %s4, %s5
  %s7 = sld [smem:[#allocation0]]
  $region89: #{_dino_forward.1} parent=0
    _
  %s9 = ssub.s32 1, %s7
  %s10 = scalar_select 0, %s9, %s7
  %11 = sst [smem:[#allocation8]] %s0
  $region1: #{_dino_forward.1} parent=0
    #allocation9 [shape = 'u8[32768]{0}', space=vmem, size = 0x8000, scoped, tag = 'input window, operand 1']
    #allocation10 [shape = 's32[2]{0}', space=sflag, size = 0x8, scoped, tag = 'scoped memory for _dino_forward.1']
    #allocation11 [shape = 's32[2]{0}', space=sflag, size = 0x8, scoped, tag = 'scoped memory for _dino_forward.1']
    #allocation12 [shape = 's32[2]{0}', space=sflag, size = 0x8, scoped, tag = 'scoped memory for _dino_forward.1']
    #allocation13 [shape = 'u8[16384]{0}', space=vmem, size = 0x4000, scoped, tag = 'input window, operand 2']
    #allocation14 [shape = 's32[2]{0}', space=sflag, size = 0x8, scoped, tag = 'scoped memory for _dino_forward.1']
    #allocation15 [shape = 'u8[512]{0}', space=smem, size = 0x200, scoped, tag = 'output window, operand 0, single buffered']
    #allocation16 [shape = 'u8[512]{0}', space=vmem, size = 0x400, scoped, tag = 'output window, operand 1, single buffered']
    %12 = vsyncpa [#allocation10], 0
    %s13 = scalar_lea.sflag [#allocation10], 1
    %14 = vsyncpa %s13, 0
    %15 = vsyncpa [#allocation14], 0
    %s16 = scalar_lea.sflag [#allocation14], 1
    %17 = vsyncpa %s16, 0
    %18 = vsyncpa [#allocation12], 0
    %19 = vsyncpa [#allocation11], 0
    loop: start=0, step=1, limit=10
    $region2: #{_dino_forward.1} parent=1 // loop_pre_header
      _
    $region3: #{_dino_forward.1} parent=1 // loop_header
      %s21 = sphi 0, %s25
      %p22 = scmp.ge.s32.totalorder %s21, 10
      %s28 = sphi 0, %s40
      %s29 = sphi 0, %s36
      %s30 = sphi 0, %s28
      %s31 = sphi 0, %s29
      %s32 = sphi 0, %s30
      %s33 = sphi 0, %s31
      %s41 = sphi 0, %s41
      %s43 = sphi 0, %s41
      %s44 = sphi 0, %s43
      %s58 = sphi 0, %s44
      %s64 = sphi 0, %s66
      %s67 = sphi 0, %s64
      %s68 = sphi 0, %s67
      %s84 = sphi 0, %s68
      %s92 = sphi 0, %s94
      %s95 = sphi 0, %s92
      %s96 = sphi 0, %s95
      %s112 = sphi 0, %s96
      %s116 = sphi 0, %s116
      %s118 = sphi 0, %s116
      %s119 = sphi 0, %s118
      %s133 = sphi 0, %s119
      %s137 = sphi 0, %s137
      %s139 = sphi 0, %s137
      %s140 = sphi 0, %s139
      %s154 = sphi 0, %s140
      %s158 = sphi 0, %s158
      %s160 = sphi 0, %s158
      %s161 = sphi 0, %s160
      %s175 = sphi 0, %s161
    $region4: #{_dino_forward.1} parent=1 // loop_header_branch
      %24 = sbr.rel (%p22) target = $region8
    $region5: #{_dino_forward.1} parent=1 // loop_body
      %s26 = ssub.s32 %s21, 1
      %s27 = ssub.s32 %s21, 2
      %s34 = sadd.s32 1, %s29
      %p35 = scmp.ge.s32.totalorder %s34, 4
      %s36 = scalar_select %p35, 0, %s34
      %s37 = sadd.s32 1, %s28
      %s38 = scalar_select %p35, %s37, %s28
      %p39 = scmp.ge.s32.totalorder %s38, 2
      %s40 = scalar_select %p39, 0, %s38
      %s42 = sadd.s32 %s41, 1
      %p45 = scmp.eq.s32.totalorder %s21, 7
      %p46 = scmp.ne.s32.totalorder %s41, %s43
      %p47 = scmp.eq.s32.totalorder %s21, 0
      %p48 = por %p46, %p47
      %p49 = scmp.ne.s32.totalorder %s41, %s43
      %p50 = scmp.eq.s32.totalorder %s26, 7
      %p51 = por %p49, %p50
      %p52 = scmp.ne.s32.totalorder %s43, %s44
      %p53 = scmp.eq.s32.totalorder %s26, 0
      %p54 = por %p52, %p53
      %p55 = scmp.ne.s32.totalorder %s43, %s44
      %p56 = scmp.eq.s32.totalorder %s27, 7
      %p57 = por %p55, %p56
      %p59 = scmp.ne.s32.totalorder %s44, %s58
      %p60 = scmp.eq.s32.totalorder %s27, 0
      %p61 = por %p59, %p60
      %s62 = ssub.s32 %s28, %s40
      %p63 = scmp.eq.s32.totalorder %s62, 0
      %s65 = sadd.s32 %s64, 1
      %s66 = scalar_select %p63, %s64, %s65
      %p69 = pneg %p63
      %p70 = scmp.eq.s32.totalorder %s21, 7
      %p71 = por %p69, %p70
      %p72 = scmp.ne.s32.totalorder %s64, %s67
      %p73 = scmp.eq.s32.totalorder %s21, 0
      %p74 = por %p72, %p73
      %p75 = scmp.ne.s32.totalorder %s64, %s67
      %p76 = scmp.eq.s32.totalorder %s26, 7
      %p77 = por %p75, %p76
      %p78 = scmp.ne.s32.totalorder %s67, %s68
      %p79 = scmp.eq.s32.totalorder %s26, 0
      %p80 = por %p78, %p79
      %p81 = scmp.ne.s32.totalorder %s67, %s68
      %p82 = scmp.eq.s32.totalorder %s27, 7
      %p83 = por %p81, %p82
      %p85 = scmp.ne.s32.totalorder %s68, %s84
      %p86 = scmp.eq.s32.totalorder %s27, 0
      %p87 = por %p85, %p86
      %s88 = ssub.s32 %s29, %s36
      %s89 = ssub.s32 %s28, %s40
      %s90 = sor.u32 %s88, %s89
      %p91 = scmp.eq.s32.totalorder %s90, 0
      %s93 = sadd.s32 %s92, 1
      %s94 = scalar_select %p91, %s92, %s93
      %p97 = pneg %p91
      %p98 = scmp.eq.s32.totalorder %s21, 7
      %p99 = por %p97, %p98
      %p100 = scmp.ne.s32.totalorder %s92, %s95
      %p101 = scmp.eq.s32.totalorder %s21, 0
      %p102 = por %p100, %p101
      %p103 = scmp.ne.s32.totalorder %s92, %s95
      %p104 = scmp.eq.s32.totalorder %s26, 7
      %p105 = por %p103, %p104
      %p106 = scmp.ne.s32.totalorder %s95, %s96
      %p107 = scmp.eq.s32.totalorder %s26, 0
      %p108 = por %p106, %p107
      %p109 = scmp.ne.s32.totalorder %s95, %s96
      %p110 = scmp.eq.s32.totalorder %s27, 7
      %p111 = por %p109, %p110
      %p113 = scmp.ne.s32.totalorder %s96, %s112
      %p114 = scmp.eq.s32.totalorder %s27, 0
      %p115 = por %p113, %p114
      %s117 = sadd.s32 %s116, 1
      %p120 = scmp.eq.s32.totalorder %s21, 7
      %p121 = scmp.ne.s32.totalorder %s116, %s118
      %p122 = scmp.eq.s32.totalorder %s21, 0
      %p123 = por %p121, %p122
      %p124 = scmp.ne.s32.totalorder %s116, %s118
      %p125 = scmp.eq.s32.totalorder %s26, 7
      %p126 = por %p124, %p125
      %p127 = scmp.ne.s32.totalorder %s118, %s119
      %p128 = scmp.eq.s32.totalorder %s26, 0
      %p129 = por %p127, %p128
      %p130 = scmp.ne.s32.totalorder %s118, %s119
      %p131 = scmp.eq.s32.totalorder %s27, 7
      %p132 = por %p130, %p131
      %p134 = scmp.ne.s32.totalorder %s119, %s133
      %p135 = scmp.eq.s32.totalorder %s27, 0
      %p136 = por %p134, %p135
      %s138 = sadd.s32 %s137, 1
      %p141 = scmp.eq.s32.totalorder %s21, 7
      %p142 = scmp.ne.s32.totalorder %s137, %s139
      %p143 = scmp.eq.s32.totalorder %s21, 0
      %p144 = por %p142, %p143
      %p145 = scmp.ne.s32.totalorder %s137, %s139
      %p146 = scmp.eq.s32.totalorder %s26, 7
      %p147 = por %p145, %p146
      %p148 = scmp.ne.s32.totalorder %s139, %s140
      %p149 = scmp.eq.s32.totalorder %s26, 0
      %p150 = por %p148, %p149
      %p151 = scmp.ne.s32.totalorder %s139, %s140
      %p152 = scmp.eq.s32.totalorder %s27, 7
      %p153 = por %p151, %p152
      %p155 = scmp.ne.s32.totalorder %s140, %s154
      %p156 = scmp.eq.s32.totalorder %s27, 0
      %p157 = por %p155, %p156
      %s159 = sadd.s32 %s158, 1
      %p162 = scmp.eq.s32.totalorder %s21, 7
      %p163 = scmp.ne.s32.totalorder %s158, %s160
      %p164 = scmp.eq.s32.totalorder %s21, 0
      %p165 = por %p163, %p164
      %p166 = scmp.ne.s32.totalorder %s158, %s160
      %p167 = scmp.eq.s32.totalorder %s26, 7
      %p168 = por %p166, %p167
      %p169 = scmp.ne.s32.totalorder %s160, %s161
      %p170 = scmp.eq.s32.totalorder %s26, 0
      %p171 = por %p169, %p170
      %p172 = scmp.ne.s32.totalorder %s160, %s161
      %p173 = scmp.eq.s32.totalorder %s27, 7
      %p174 = por %p172, %p173
      %p176 = scmp.ne.s32.totalorder %s161, %s175
      %p177 = scmp.eq.s32.totalorder %s27, 0
      %p178 = por %p176, %p177
      %p179 = scmp.le.s32.totalorder 1, %s21
      %p180 = scmp.lt.s32.totalorder %s21, 9
      %p181 = pnand %p179, %p180
      %p182 = pneg %p181
      // Predicated region
      $region9: #{_dino_forward.1} parent=5 // pred_check
        _
      $region10: #{_dino_forward.1} parent=5 // pred_check_branch
        %184 = sbr.rel (%p181) target = $region12
      $region11: #{_dino_forward.1} parent=5 // pred_region
        %s185 = ssub.s32 %s21, 1
        // Predicated region
        $region13: #{_dino_forward.1} parent=11 // pred_check
          %p186 = pneg %p54
        $region14: #{_dino_forward.1} parent=11 // pred_check_branch
          %188 = sbr.rel (%p186) target = $region16
        $region15: #{_dino_forward.1} parent=11 // pred_region
          _
        $region16: #{_dino_forward.1} parent=11 // pred_fallthru
          _
        // Predicated region
        $region17: #{_dino_forward.1} parent=11 // pred_check
          %p189 = pneg %p129
        $region18: #{_dino_forward.1} parent=11 // pred_check_branch
          %191 = sbr.rel (%p189) target = $region20
        $region19: #{_dino_forward.1} parent=11 // pred_region
          _
        $region20: #{_dino_forward.1} parent=11 // pred_fallthru
          _
      $region12: #{_dino_forward.1} parent=5 // pred_fallthru
        _
      %p192 = scmp.lt.s32.totalorder %s21, 8
      // Predicated region
      $region21: #{_dino_forward.1} parent=5 // pred_check
        %p193 = pneg %p192
      $region22: #{_dino_forward.1} parent=5 // pred_check_branch
        %195 = sbr.rel (%p193) target = $region24
      $region23: #{_dino_forward.1} parent=5 // pred_region
        // Predicated region
        $region25: #{_dino_forward.1} parent=23 // pred_check
          %p196 = pneg %p74
        $region26: #{_dino_forward.1} parent=23 // pred_check_branch
          %198 = sbr.rel (%p196) target = $region28
        $region27: #{_dino_forward.1} parent=23 // pred_region
          #allocation18 [shape = 'u32[6]{0}', space=smem, size = 0x18, scoped, tag = 'DMA stride descriptor']
          %s199 = sand.u32 %s64, 1
          %s200 = scalar_lea.sflag [#allocation10], %s199
          %s201 = sand.u32 %s64, 1
          %s202 = smul.addr %s201, 32
          %s203 = scalar_lea.vmem [#allocation9], %s202
          %s204 = smul.u32 2, %s28
          %206 = vsyncadd %s200, 0
          %s207 = smul.addr %s204, 8
          %s208 = scalar_lea.hbm %s1, %s207
          %s210 = sshll.u32 1, 14
          %s211 = sxor.u32 4294967295, %s210
          %s213 = sld [smem:[#allocation0]]
          %s214 = sadd.s32 2, %s213
          %s216 = sshll.u32 7, 26
          %s217 = sxor.u32 4294967295, %s216
          %s218 = sand.u32 0, %s217
          %s219 = sshll.u32 %s214, 26
          %s220 = sor.u32 %s218, %s219
          %s221 = sshll.u32 %s208, 4
          %s222 = int_to_ptr.hbm [resolvable:$true] %s221
          %s223 = sshll.u32 %s203, 4
          %s224 = int_to_ptr.vmem [resolvable:$true] %s223
          %230 = sst [smem:[#allocation18]] 512
          %s231 = scalar_lea.smem [#allocation18], 1
          %232 = sst [smem:[%s231]] 256
          %s233 = scalar_lea.smem [#allocation18], 2
          %234 = sst [smem:[%s233]] 2
          %s235 = scalar_lea.smem [#allocation18], 3
          %236 = sst [smem:[%s235]] 128
          %s237 = scalar_lea.smem [#allocation18], 4
          %238 = sst [smem:[%s237]] 128
          %s239 = scalar_lea.smem [#allocation18], 5
          %240 = sst [smem:[%s239]] 8
          %242 = dma.general %s222, 512, %s224, %s200, [#allocation17], [#allocation18], %s220, 0
        $region28: #{_dino_forward.1} parent=23 // pred_fallthru
          _
        // Predicated region
        $region29: #{_dino_forward.1} parent=23 // pred_check
          %p243 = pneg %p102
        $region30: #{_dino_forward.1} parent=23 // pred_check_branch
          %245 = sbr.rel (%p243) target = $region32
        $region31: #{_dino_forward.1} parent=23 // pred_region
          %s246 = sand.u32 %s92, 1
          %s247 = scalar_lea.sflag [#allocation14], %s246
          %s248 = sand.u32 %s92, 1
          %s249 = smul.addr %s248, 16
          %s250 = scalar_lea.vmem [#allocation13], %s249
          %s251 = smul.u32 2, %s28
          %253 = vsyncadd %s247, 0
          %s254 = smul.addr %s29, 4
          %s255 = sadd.s32 %s251, %s254
          %s256 = smul.addr %s255, 8
          %s257 = scalar_lea.hbm %s2, %s256
          %s258 = sshll.u32 %s257, 4
          %s259 = int_to_ptr.hbm [resolvable:$true] %s258
          %s260 = sshll.u32 %s250, 4
          %s261 = int_to_ptr.vmem [resolvable:$true] %s260
          %266 = dma.hbm_to_vmem [thread:$0]  %s259, 256, %s261, %s247, 128, 128, 8
        $region32: #{_dino_forward.1} parent=23 // pred_fallthru
          _
      $region24: #{_dino_forward.1} parent=5 // pred_fallthru
        _
      %p267 = scmp.le.s32.totalorder 1, %s21
      %p268 = scmp.lt.s32.totalorder %s21, 9
      %p269 = pnand %p267, %p268
      %p270 = pneg %p269
      // Predicated region
      $region33: #{_dino_forward.1} parent=5 // pred_check
        _
      $region34: #{_dino_forward.1} parent=5 // pred_check_branch
        %272 = sbr.rel (%p269) target = $region36
      $region35: #{_dino_forward.1} parent=5 // pred_region
        %s273 = ssub.s32 %s21, 1
        %s274 = sand.u32 %s67, 1
        %s275 = scalar_lea.sflag [#allocation10], %s274
        %s276 = sand.u32 %s67, 1
        %s277 = smul.addr %s276, 32
        %s278 = scalar_lea.vmem [#allocation9], %s277
        // Predicated region
        $region37: #{_dino_forward.1} parent=35 // pred_check
          %p279 = pneg %p80
        $region38: #{_dino_forward.1} parent=35 // pred_check_branch
          %281 = sbr.rel (%p279) target = $region40
        $region39: #{_dino_forward.1} parent=35 // pred_region
          %283 = dma.done %s275, 512
        $region40: #{_dino_forward.1} parent=35 // pred_fallthru
          _
        %s284 = sand.u32 %s95, 1
        %s285 = scalar_lea.sflag [#allocation14], %s284
        %s286 = sand.u32 %s95, 1
        %s287 = smul.addr %s286, 16
        %s288 = scalar_lea.vmem [#allocation13], %s287
        // Predicated region
        $region41: #{_dino_forward.1} parent=35 // pred_check
          %p289 = pneg %p108
        $region42: #{_dino_forward.1} parent=35 // pred_check_branch
          %291 = sbr.rel (%p289) target = $region44
        $region43: #{_dino_forward.1} parent=35 // pred_region
          %293 = dma.done %s285, 256
        $region44: #{_dino_forward.1} parent=35 // pred_fallthru
          _
        %p294 = pneg %p54
        %p295 = pneg %p51
        %s296 = sand.u32 %s67, 1
        %s297 = scalar_lea.sflag [#allocation10], %s296
        %s298 = sand.u32 %s67, 1
        %s299 = smul.addr %s298, 32
        %s300 = scalar_lea.vmem [#allocation9], %s299
        %p301 = pneg %p80
        %p302 = pneg %p77
        %s303 = sand.u32 %s95, 1
        %s304 = scalar_lea.sflag [#allocation14], %s303
        %s305 = sand.u32 %s95, 1
        %s306 = smul.addr %s305, 16
        %s307 = scalar_lea.vmem [#allocation13], %s306
        %p308 = pneg %p108
        %p309 = pneg %p105
        %p310 = pneg %p129
        %p311 = pneg %p126
        %p312 = pneg %p150
        %p313 = pneg %p147
        %p314 = pneg %p171
        %p315 = pneg %p168
        %s316 = smul.u32 2, %s30
        %s317 = smul.u32 2, %s30
        %p318 = scmp.eq.s32.totalorder %s30, 0
        %p319 = scmp.eq.s32.totalorder %s31, 0
        %p320 = pnand %p318, %p319
        %p321 = pneg %p320
        // Predicated region
        $region45: #{_dino_forward.1} parent=35 // pred_check
          _
        $region46: #{_dino_forward.1} parent=35 // pred_check_branch
          %323 = sbr.rel (%p320) target = $region48
        $region47: #{_dino_forward.1} parent=35 // pred_region
          %324 = vst [vmem:[#allocation5] sm:$0xff] 0.0
          %325 = vst [vmem:[#allocation5 + $0x8] sm:$0xff] 0.0
          %vm326 = vcmask 7168
          %327 = vst.msk [vmem:[#allocation6] sm:$0xff] %vm326, 0.0
          %328 = vst.msk [vmem:[#allocation6 + $0x8] sm:$0xff] %vm326, 0.0
          %329 = vst [vmem:[#allocation7] sm:$0x1] 0.0
        $region48: #{_dino_forward.1} parent=35 // pred_fallthru
          _
        // Predicated region
        $region49: #{_dino_forward.1} parent=35 // pred_check
          %p330 = pneg %p319
        $region50: #{_dino_forward.1} parent=35 // pred_check_branch
          %332 = sbr.rel (%p330) target = $region52
        $region51: #{_dino_forward.1} parent=35 // pred_region
          %s333 = sld [smem:[#allocation8]]
          %v334 = vld [vmem:[%s278] sm:$0xff]
          %v335 = vld [vmem:[%s278 + $0x8] sm:$0xff]
          %v336 = vld [vmem:[%s278 + $0x10] sm:$0xff]
          %v337 = vld [vmem:[%s278 + $0x18] sm:$0xff]
          %v338 = vld [vmem:[%s3] sm:$0x1]
          %v340 = vperm.slane %v338, 0
          %v342 = vsub.f32 %v334, %v340
          %v343 = vsub.f32 %v335, %v340
          %v344 = vsub.f32 %v336, %v340
          %v345 = vsub.f32 %v337, %v340
          %v346 = vstv %s333
          %v347 = vmul.f32 %v342, %v346
          %v348 = vmul.f32 %v343, %v346
          %v349 = vmul.f32 %v344, %v346
          %v350 = vmul.f32 %v345, %v346
          %351 = vmax.xlane.f32.xlu0 %v347
          %v352 = vpop.xlane.xlu0 %351
          %353 = vmax.xlane.f32.xlu0 %v348
          %v354 = vpop.xlane.xlu0 %353
          %355 = vmax.xlane.f32.xlu0 %v349
          %v356 = vpop.xlane.xlu0 %355
          %357 = vmax.xlane.f32.xlu0 %v350
          %v358 = vpop.xlane.xlu0 %357
          %v359 = vsub.f32 %v347, %v352
          %v360 = vsub.f32 %v348, %v354
          %v361 = vsub.f32 %v349, %v356
          %v362 = vsub.f32 %v350, %v358
          %v363 = vmul.f32 %v359, 1.442695
          %v364 = vpow.pop %v363
          %v365 = vmul.f32 %v360, 1.442695
          %v366 = vpow.pop %v365
          %v367 = vmul.f32 %v361, 1.442695
          %v368 = vpow.pop %v367
          %v369 = vmul.f32 %v362, 1.442695
          %v370 = vpow.pop %v369
          %371 = vadd.xlane.f32.xlu0 %v364
          %v372 = vpop.xlane.xlu0 %371
          %373 = vadd.xlane.f32.xlu0 %v366
          %v374 = vpop.xlane.xlu0 %373
          %375 = vadd.xlane.f32.xlu0 %v368
          %v376 = vpop.xlane.xlu0 %375
          %377 = vadd.xlane.f32.xlu0 %v370
          %v378 = vpop.xlane.xlu0 %377
          %v379 = vrcp.pop %v372
          %v380 = vmul.f32 %v372, %v379
          %v381 = vsub.f32 1.0, %v380
          %v382 = vmul.f32 %v379, %v381
          %v383 = vadd.f32 %v379, %v382
          %vm384 = vweird.f32 %v372
          %vm385 = vweird.f32 %v379
          %vm386 = vmor %vm384, %vm385
          %v387 = vsel %vm386, %v379, %v383
          %v388 = vand.u32 2147483647, %v372
          %vm389 = vcmp.eq.f32.partialorder %v388, 8.507059e+37
          %v390 = vand.u32 %v372, 2147483648
          %v391 = vor.u32 1.1754944e-38, %v390
          %v392 = vsel %vm389, %v391, %v387
          %v393 = vmul.f32 %v364, %v392
          %v394 = vrcp.pop %v374
          %v395 = vmul.f32 %v374, %v394
          %v396 = vsub.f32 1.0, %v395
          %v397 = vmul.f32 %v394, %v396
          %v398 = vadd.f32 %v394, %v397
          %vm399 = vweird.f32 %v374
          %vm400 = vweird.f32 %v394
          %vm401 = vmor %vm399, %vm400
          %v402 = vsel %vm401, %v394, %v398
          %v403 = vand.u32 2147483647, %v374
          %vm404 = vcmp.eq.f32.partialorder %v403, 8.507059e+37
          %v405 = vand.u32 %v374, 2147483648
          %v406 = vor.u32 1.1754944e-38, %v405
          %v407 = vsel %vm404, %v406, %v402
          %v408 = vmul.f32 %v366, %v407
          %v409 = vrcp.pop %v376
          %v410 = vmul.f32 %v376, %v409
          %v411 = vsub.f32 1.0, %v410
          %v412 = vmul.f32 %v409, %v411
          %v413 = vadd.f32 %v409, %v412
          %vm414 = vweird.f32 %v376
          %vm415 = vweird.f32 %v409
          %vm416 = vmor %vm414, %vm415
          %v417 = vsel %vm416, %v409, %v413
          %v418 = vand.u32 2147483647, %v376
          %vm419 = vcmp.eq.f32.partialorder %v418, 8.507059e+37
          %v420 = vand.u32 %v376, 2147483648
          %v421 = vor.u32 1.1754944e-38, %v420
          %v422 = vsel %vm419, %v421, %v417
          %v423 = vmul.f32 %v368, %v422
          %v424 = vrcp.pop %v378
          %v425 = vmul.f32 %v378, %v424
          %v426 = vsub.f32 1.0, %v425
          %v427 = vmul.f32 %v424, %v426
          %v428 = vadd.f32 %v424, %v427
          %vm429 = vweird.f32 %v378
          %vm430 = vweird.f32 %v424
          %vm431 = vmor %vm429, %vm430
          %v432 = vsel %vm431, %v424, %v428
          %v433 = vand.u32 2147483647, %v378
          %vm434 = vcmp.eq.f32.partialorder %v433, 8.507059e+37
          %v435 = vand.u32 %v378, 2147483648
          %v436 = vor.u32 1.1754944e-38, %v435
          %v437 = vsel %vm434, %v436, %v432
          %v438 = vmul.f32 %v370, %v437
          %v439 = vpack.c.bf16 %v393, %v393
          %v440 = vpack.c.bf16 %v408, %v408
          %v441 = vpack.c.bf16 %v423, %v423
          %v442 = vpack.c.bf16 %v438, %v438
          %443 = vst [vmem:[#allocation2] sm:$0xf] %v439
          %444 = vst [vmem:[#allocation2 + $0x4] sm:$0xf] %v440
          %445 = vst [vmem:[#allocation2 + $0x8] sm:$0xf] %v441
          %446 = vst [vmem:[#allocation2 + $0xc] sm:$0xf] %v442
          %v447 = vunpack.c.l.bf16 %v439
          %v448 = vunpack.c.l.bf16 %v440
          %v449 = vunpack.c.l.bf16 %v441
          %v450 = vunpack.c.l.bf16 %v442
          %v451 = vadd.f32 %v447, %v449
          %v452 = vadd.f32 %v448, %v450
          %v453 = vpack.c.bf16 %v451, %v451
          %v454 = vpack.c.bf16 %v452, %v452
          %455 = vst [vmem:[#allocation3] sm:$0xf] %v453
          %456 = vst [vmem:[#allocation3 + $0x4] sm:$0xf] %v454
          %v457 = vunpack.c.l.bf16 %v453
          %v458 = vunpack.c.l.bf16 %v454
          %459 = vadd.xlane.f32.xlu0 %v457
          %v460 = vpop.xlane.xlu0 %459
          %461 = vadd.xlane.f32.xlu0 %v458
          %v462 = vpop.xlane.xlu0 %461
          %s463 = scalar_lea.vmem [#allocation4], 32
          %vm464 = vcmask 7168
          %465 = vst.msk [vmem:[%s463] sm:$0xff] %vm464, %v460
          %466 = vst.msk [vmem:[%s463 + $0x8] sm:$0xff] %vm464, %v462
          %467 = vadd.xlane.f32.xlu0 %v447
          %v468 = vpop.xlane.xlu0 %467
          %469 = vadd.xlane.f32.xlu0 %v448
          %v470 = vpop.xlane.xlu0 %469
          %471 = vst.msk [vmem:[#allocation4] sm:$0xff] %vm464, %v468
          %472 = vst.msk [vmem:[#allocation4 + $0x8] sm:$0xff] %vm464, %v470
          %473 = vadd.xlane.f32.xlu0 %v449
          %v474 = vpop.xlane.xlu0 %473
          %475 = vadd.xlane.f32.xlu0 %v450
          %v476 = vpop.xlane.xlu0 %475
          %s477 = scalar_lea.vmem [#allocation4], 16
          %478 = vst.msk [vmem:[%s477] sm:$0xff] %vm464, %v474
          %479 = vst.msk [vmem:[%s477 + $0x8] sm:$0xff] %vm464, %v476
          %v480 = vld [vmem:[#allocation7] sm:$0x1]
          %v481 = vadd.f32 %v334, %v336
          %v482 = vadd.f32 %v335, %v337
          %v483 = vadd.f32 %v481, %v482
          %v484 = vrot.slane %v483, 4
          %v485 = vadd.f32 %v483, %v484
          %v486 = vrot.slane %v485, 2
          %v487 = vadd.f32 %v485, %v486
          %v488 = vrot.slane %v487, 1
          %v489 = vadd.f32 %v487, %v488
          %v490 = vadd.f32 %v480, %v489
          %491 = vst [vmem:[#allocation7] sm:$0x1] %v490
        $region52: #{_dino_forward.1} parent=35 // pred_fallthru
          _
        %p492 = scmp.eq.s32.totalorder %s30, 1
        %p493 = pnand %p319, %p492
        %p494 = pneg %p493
        // Predicated region
        $region53: #{_dino_forward.1} parent=35 // pred_check
          _
        $region54: #{_dino_forward.1} parent=35 // pred_check_branch
          %496 = sbr.rel (%p493) target = $region56
        $region55: #{_dino_forward.1} parent=35 // pred_region
          %v497 = vld [vmem:[#allocation7] sm:$0x1]
          %v498 = vmul.f32 %v497, 0.015625
          %v499 = vld [vmem:[%s3] sm:$0x1]
          %v500 = vmul.f32 %v499, 0.9
          %v501 = vmul.f32 %v498, 0.1
          %v502 = vadd.f32 %v500, %v501
          %503 = vst [vmem:[#allocation16] sm:$0x1] %v502
        $region56: #{_dino_forward.1} parent=35 // pred_fallthru
          _
        %v504 = vld [vmem:[%s288] sm:$0xff]
        %v505 = vld [vmem:[%s288 + $0x8] sm:$0xff]
        %v506 = vmul.f32 %v504, 10.0
        %v507 = vmul.f32 %v505, 10.0
        %508 = vmax.xlane.f32.xlu0 %v506
        %v509 = vpop.xlane.xlu0 %508
        %510 = vmax.xlane.f32.xlu0 %v507
        %v511 = vpop.xlane.xlu0 %510
        %v512 = vsub.f32 %v506, %v509
        %v513 = vsub.f32 %v507, %v511
        %v514 = vmul.f32 %v512, 1.442695
        %v515 = vpow.pop %v514
        %v516 = vmul.f32 %v513, 1.442695
        %v517 = vpow.pop %v516
        %518 = vadd.xlane.f32.xlu0 %v515
        %v519 = vpop.xlane.xlu0 %518
        %520 = vadd.xlane.f32.xlu0 %v517
        %v521 = vpop.xlane.xlu0 %520
        %v522 = vlog2.pop %v519
        %v523 = vmul.f32 %v522, 0.6931472
        %v524 = vlog2.pop %v521
        %v525 = vmul.f32 %v524, 0.6931472
        %v526 = vadd.f32 %v509, %v523
        %v527 = vadd.f32 %v511, %v525
        %v528 = vld [vmem:[#allocation3] sm:$0xf]
        %v529 = vld [vmem:[#allocation3 + $0x4] sm:$0xf]
        %v530 = vunpack.c.l.bf16 %v528
        %v531 = vunpack.c.l.bf16 %v529
        %p532 = scmp.lt.s32.totalorder %s31, 2
        // Predicated region
        $region57: #{_dino_forward.1} parent=35 // pred_check
          %p533 = pneg %p532
        $region58: #{_dino_forward.1} parent=35 // pred_check_branch
          %535 = sbr.rel (%p533) target = $region60
        $region59: #{_dino_forward.1} parent=35 // pred_region
          %s536 = smul.u32 %s31, 2
          %s537 = smul.addr %s536, 4
          %s538 = scalar_lea.vmem [#allocation2], %s537
          %v539 = vld [vmem:[%s538] sm:$0xf]
          %v540 = vld [vmem:[%s538 + $0x4] sm:$0xf]
          %v541 = vunpack.c.l.bf16 %v539
          %v542 = vunpack.c.l.bf16 %v540
          %v543 = vsub.f32 %v530, %v541
          %v544 = vsub.f32 %v531, %v542
          %v545 = vld [vmem:[#allocation5] sm:$0xff]
          %v546 = vld [vmem:[#allocation5 + $0x8] sm:$0xff]
          %v547 = vmul.f32 %v543, %v506
          %v548 = vmul.f32 %v544, %v507
          %v549 = vadd.f32 %v545, %v547
          %v550 = vadd.f32 %v546, %v548
          %551 = vst [vmem:[#allocation5] sm:$0xff] %v549
          %552 = vst [vmem:[#allocation5 + $0x8] sm:$0xff] %v550
          %v553 = vld [vmem:[#allocation6] sm:$0xff]
          %v554 = vld [vmem:[#allocation6 + $0x8] sm:$0xff]
          %s555 = scalar_lea.vmem [#allocation4], 32
          %v556 = vld [vmem:[%s555] sm:$0xff]
          %v557 = vld [vmem:[%s555 + $0x8] sm:$0xff]
          %s558 = smul.u32 %s31, 16
          %s559 = scalar_lea.vmem [#allocation4], %s558
          %v560 = vld [vmem:[%s559] sm:$0xff]
          %v561 = vld [vmem:[%s559 + $0x8] sm:$0xff]
          %v562 = vsub.f32 %v556, %v560
          %v563 = vsub.f32 %v557, %v561
          %v564 = vmul.f32 %v562, %v526
          %v565 = vmul.f32 %v563, %v527
          %v566 = vadd.f32 %v553, %v564
          %v567 = vadd.f32 %v554, %v565
          %vm568 = vcmask 7168
          %569 = vst.msk [vmem:[#allocation6] sm:$0xff] %vm568, %v566
          %570 = vst.msk [vmem:[#allocation6 + $0x8] sm:$0xff] %vm568, %v567
        $region60: #{_dino_forward.1} parent=35 // pred_fallthru
          _
        %p571 = scmp.ge.s32.totalorder %s31, 2
        // Predicated region
        $region61: #{_dino_forward.1} parent=35 // pred_check
          %p572 = pneg %p571
        $region62: #{_dino_forward.1} parent=35 // pred_check_branch
          %574 = sbr.rel (%p572) target = $region64
        $region63: #{_dino_forward.1} parent=35 // pred_region
          %v575 = vld [vmem:[#allocation5] sm:$0xff]
          %v576 = vld [vmem:[#allocation5 + $0x8] sm:$0xff]
          %v577 = vmul.f32 %v530, %v506
          %v578 = vmul.f32 %v531, %v507
          %v579 = vadd.f32 %v575, %v577
          %v580 = vadd.f32 %v576, %v578
          %581 = vst [vmem:[#allocation5] sm:$0xff] %v579
          %582 = vst [vmem:[#allocation5 + $0x8] sm:$0xff] %v580
          %v583 = vld [vmem:[#allocation6] sm:$0xff]
          %v584 = vld [vmem:[#allocation6 + $0x8] sm:$0xff]
          %s585 = scalar_lea.vmem [#allocation4], 32
          %v586 = vld [vmem:[%s585] sm:$0xff]
          %v587 = vld [vmem:[%s585 + $0x8] sm:$0xff]
          %v588 = vmul.f32 %v586, %v526
          %v589 = vmul.f32 %v587, %v527
          %v590 = vadd.f32 %v583, %v588
          %v591 = vadd.f32 %v584, %v589
          %vm592 = vcmask 7168
          %593 = vst.msk [vmem:[#allocation6] sm:$0xff] %vm592, %v590
          %594 = vst.msk [vmem:[#allocation6 + $0x8] sm:$0xff] %vm592, %v591
        $region64: #{_dino_forward.1} parent=35 // pred_fallthru
          _
        %p595 = scmp.eq.s32.totalorder %s31, 3
        %p596 = pnand %p492, %p595
        %p597 = pneg %p596
        // Predicated region
        $region65: #{_dino_forward.1} parent=35 // pred_check
          _
        $region66: #{_dino_forward.1} parent=35 // pred_check_branch
          %599 = sbr.rel (%p596) target = $region68
        $region67: #{_dino_forward.1} parent=35 // pred_region
          %v600 = vld [vmem:[#allocation6] sm:$0xff]
          %v601 = vld [vmem:[#allocation6 + $0x8] sm:$0xff]
          %vm602 = vcmask 7168
          %v603 = vsel %vm602, %v600, 0.0
          %v604 = vsel %vm602, %v601, 0.0
          %v605 = vadd.f32 %v603, %v604
          %606 = vadd.xlane.f32.xlu0 %v605
          %v607 = vpop.xlane.xlu0 %606
          %v608 = vrot.slane %v607, 4
          %v609 = vadd.f32 %v607, %v608
          %v610 = vrot.slane %v609, 2
          %v611 = vadd.f32 %v609, %v610
          %v612 = vrot.slane %v611, 1
          %v613 = vadd.f32 %v611, %v612
          %s614 = vtos %v613
          %v615 = vld [vmem:[#allocation5] sm:$0xff]
          %v616 = vld [vmem:[#allocation5 + $0x8] sm:$0xff]
          %v617 = vadd.f32 %v615, %v616
          %618 = vadd.xlane.f32.xlu0 %v617
          %v619 = vpop.xlane.xlu0 %618
          %v620 = vrot.slane %v619, 4
          %v621 = vadd.f32 %v619, %v620
          %v622 = vrot.slane %v621, 2
          %v623 = vadd.f32 %v621, %v622
          %v624 = vrot.slane %v623, 1
          %v625 = vadd.f32 %v623, %v624
          %s626 = vtos %v625
          %s627 = ssub.f32 %s614, %s626
          %s628 = smul.f32 %s627, 0.0052083335
          %s629 = scalar_lea.smem [#allocation15], 0
          %630 = sst [smem:[%s629]] %s628
        $region68: #{_dino_forward.1} parent=35 // pred_fallthru
          _
        // Predicated region
        $region69: #{_dino_forward.1} parent=35 // pred_check
          %p631 = pneg %p147
        $region70: #{_dino_forward.1} parent=35 // pred_check_branch
          %633 = sbr.rel (%p631) target = $region72
        $region71: #{_dino_forward.1} parent=35 // pred_region
          %635 = vsyncadd [#allocation12], 0
          %s637 = sshll.u32 %s4, 4
          %s638 = int_to_ptr.hbm [resolvable:$true] %s637
          %640 = dma.smem_to_hbm [#allocation15], 16, %s638, [#allocation12]
        $region72: #{_dino_forward.1} parent=35 // pred_fallthru
          _
        // Predicated region
        $region73: #{_dino_forward.1} parent=35 // pred_check
          %p641 = pneg %p168
        $region74: #{_dino_forward.1} parent=35 // pred_check_branch
          %643 = sbr.rel (%p641) target = $region76
        $region75: #{_dino_forward.1} parent=35 // pred_region
          %645 = vsyncadd [#allocation11], 0
          %s647 = sshll.u32 [#allocation16], 4
          %s648 = int_to_ptr.vmem [resolvable:$true] %s647
          %s649 = sshll.u32 %s5, 4
          %s650 = int_to_ptr.hbm [resolvable:$true] %s649
          %652 = dma.vmem_to_hbm [thread:$0]  %s648, 16, %s650, [#allocation11]
        $region76: #{_dino_forward.1} parent=35 // pred_fallthru
          _
        // Predicated region
        $region77: #{_dino_forward.1} parent=35 // pred_check
          %p653 = pneg %p147
        $region78: #{_dino_forward.1} parent=35 // pred_check_branch
          %655 = sbr.rel (%p653) target = $region80
        $region79: #{_dino_forward.1} parent=35 // pred_region
          %657 = dma.done [#allocation12], 16
        $region80: #{_dino_forward.1} parent=35 // pred_fallthru
          _
        // Predicated region
        $region81: #{_dino_forward.1} parent=35 // pred_check
          %p658 = pneg %p168
        $region82: #{_dino_forward.1} parent=35 // pred_check_branch
          %660 = sbr.rel (%p658) target = $region84
        $region83: #{_dino_forward.1} parent=35 // pred_region
          %662 = dma.done [#allocation11], 16
        $region84: #{_dino_forward.1} parent=35 // pred_fallthru
          _
        %663 = sfence
      $region36: #{_dino_forward.1} parent=5 // pred_fallthru
        _
      %p664 = scmp.le.s32.totalorder 2, %s21
      // Predicated region
      $region85: #{_dino_forward.1} parent=5 // pred_check
        %p665 = pneg %p664
      $region86: #{_dino_forward.1} parent=5 // pred_check_branch
        %667 = sbr.rel (%p665) target = $region88
      $region87: #{_dino_forward.1} parent=5 // pred_region
        %s668 = ssub.s32 %s21, 2
      $region88: #{_dino_forward.1} parent=5 // pred_fallthru
        _
    $region6: #{_dino_forward.1} parent=1 // loop_footer
      %s25 = sadd.s32 1, %s21
    $region7: #{_dino_forward.1} parent=1 // loop_footer_branch
      %20 = sbr.rel target = $region3
    $region8: #{_dino_forward.1} parent=1 // loop_exit
      _
    %669 = vsyncpa [#allocation10], 1
    %s670 = scalar_lea.sflag [#allocation10], 1
    %671 = vsyncpa %s670, 1
    %672 = vsyncpa [#allocation14], 1
    %s673 = scalar_lea.sflag [#allocation14], 1
    %674 = vsyncpa %s673, 1
    %675 = vsyncpa [#allocation11], 1
    %s676 = scalar_lea.sflag [#allocation11], 1
    %677 = vsyncpa %s676, 1
    %678 = vsyncpa [#allocation12], 1
    %s679 = scalar_lea.sflag [#allocation12], 1
    %680 = vsyncpa %s679, 1

// kernel: _dino_forward.1
$region0: #{_dino_forward.1}
  #allocation0 [shape = 'u32[]', space=smem, size = 0x4, offset = 0x4, fixed_abs, tag = 'smem constant byte address 0x4 - core index']
  #allocation1 [shape = 'u32[72,128]{1,0:T(1,128)}', space=vmem, size = 0x9000, scoped, tag = 'internal scratch']
  #allocation2 [shape = 'bf16[2,16,128]{2,1,0:T(8,128)(2,1)}', space=vmem, size = 0x2000, scoped, tag = 'scratch operand']
  #allocation3 [shape = 'bf16[16,128]{1,0:T(8,128)(2,1)}', space=vmem, size = 0x1000, scoped, tag = 'scratch operand']
  #allocation4 [shape = 'f32[3,16,1]{2,1,0:T(8,128)}', space=vmem, size = 0x6000, scoped, tag = 'scratch operand']
  #allocation5 [shape = 'f32[16,128]{1,0:T(8,128)}', space=vmem, size = 0x2000, scoped, tag = 'scratch operand']
  #allocation6 [shape = 'f32[16,1]{1,0:T(8,128)}', space=vmem, size = 0x2000, scoped, tag = 'scratch operand']
  #allocation7 [shape = 'f32[1,128]{1,0:T(1,128)}', space=vmem, size = 0x200, scoped, tag = 'scratch operand']
  #allocation8 [shape = 'f32[1,1]{1,0:T(1,128)S(6)}', space=smem, size = 0x200, scoped, tag = 'scoped memory for _dino_forward.1']
  #allocation17 [shape = 's32[]', space=sflag, size = 0x4, offset = 0, fixed_abs, tag = 'sflag constant byte address 0x0 - dummy sync flag']
  %s0 = inlined_call_operand.<no memory space> [shape: f32[1,1], index: 0, kind: input, shape index: {}]
  %s1 = inlined_call_operand.hbm [shape: f32[2,32,128], index: 1, kind: input, shape index: {}]
  %s2 = inlined_call_operand.hbm [shape: f32[4,32,128], index: 2, kind: input, shape index: {}]
  %s3 = inlined_call_operand.vmem [shape: f32[1,128], index: 3, kind: input, shape index: {}]
  %s4 = inlined_call_operand.hbm [shape: f32[1,1], index: 4, kind: output, shape index: {0}]
  %s5 = inlined_call_operand.hbm [shape: f32[1,128], index: 5, kind: output, shape index: {1}]
  %6 = xla_tuple %s4, %s5
  %s7 = sld [smem:[#allocation0]]
  $region89: #{_dino_forward.1} parent=0
    _
  %s9 = ssub.s32 1, %s7
  %s10 = scalar_select 0, %s9, %s7
  %11 = sst [smem:[#allocation8]] %s0
  $region1: #{_dino_forward.1} parent=0
    #allocation9 [shape = 'u8[32768]{0}', space=vmem, size = 0x8000, scoped, tag = 'input window, operand 1']
    #allocation10 [shape = 's32[2]{0}', space=sflag, size = 0x8, scoped, tag = 'scoped memory for _dino_forward.1']
    #allocation11 [shape = 's32[2]{0}', space=sflag, size = 0x8, scoped, tag = 'scoped memory for _dino_forward.1']
    #allocation12 [shape = 's32[2]{0}', space=sflag, size = 0x8, scoped, tag = 'scoped memory for _dino_forward.1']
    #allocation13 [shape = 'u8[16384]{0}', space=vmem, size = 0x4000, scoped, tag = 'input window, operand 2']
    #allocation14 [shape = 's32[2]{0}', space=sflag, size = 0x8, scoped, tag = 'scoped memory for _dino_forward.1']
    #allocation15 [shape = 'u8[512]{0}', space=smem, size = 0x200, scoped, tag = 'output window, operand 0, single buffered']
    #allocation16 [shape = 'u8[512]{0}', space=vmem, size = 0x400, scoped, tag = 'output window, operand 1, single buffered']
    %12 = vsyncpa [#allocation10], 0
    %s13 = scalar_lea.sflag [#allocation10], 1
    %14 = vsyncpa %s13, 0
    %15 = vsyncpa [#allocation14], 0
    %s16 = scalar_lea.sflag [#allocation14], 1
    %17 = vsyncpa %s16, 0
    %18 = vsyncpa [#allocation12], 0
    %19 = vsyncpa [#allocation11], 0
    loop: start=0, step=1, limit=10
    $region2: #{_dino_forward.1} parent=1 // loop_pre_header
      _
    $region3: #{_dino_forward.1} parent=1 // loop_header
      %s21 = sphi 0, %s25
      %p22 = scmp.ge.s32.totalorder %s21, 10
      %s28 = sphi 0, %s40
      %s29 = sphi 0, %s36
      %s30 = sphi 0, %s28
      %s31 = sphi 0, %s29
      %s32 = sphi 0, %s30
      %s33 = sphi 0, %s31
      %s41 = sphi 0, %s41
      %s43 = sphi 0, %s41
      %s44 = sphi 0, %s43
      %s58 = sphi 0, %s44
      %s64 = sphi 0, %s66
      %s67 = sphi 0, %s64
      %s68 = sphi 0, %s67
      %s84 = sphi 0, %s68
      %s92 = sphi 0, %s94
      %s95 = sphi 0, %s92
      %s96 = sphi 0, %s95
      %s112 = sphi 0, %s96
      %s116 = sphi 0, %s116
      %s118 = sphi 0, %s116
      %s119 = sphi 0, %s118
      %s133 = sphi 0, %s119
      %s137 = sphi 0, %s137
      %s139 = sphi 0, %s137
      %s140 = sphi 0, %s139
      %s154 = sphi 0, %s140
      %s158 = sphi 0, %s158
      %s160 = sphi 0, %s158
      %s161 = sphi 0, %s160
      %s175 = sphi 0, %s161
    $region4: #{_dino_forward.1} parent=1 // loop_header_branch
      %24 = sbr.rel (%p22) target = $region8
    $region5: #{_dino_forward.1} parent=1 // loop_body
      %s26 = ssub.s32 %s21, 1
      %s27 = ssub.s32 %s21, 2
      %s34 = sadd.s32 1, %s29
      %p35 = scmp.ge.s32.totalorder %s34, 4
      %s36 = scalar_select %p35, 0, %s34
      %s37 = sadd.s32 1, %s28
      %s38 = scalar_select %p35, %s37, %s28
      %p39 = scmp.ge.s32.totalorder %s38, 2
      %s40 = scalar_select %p39, 0, %s38
      %s42 = sadd.s32 %s41, 1
      %p45 = scmp.eq.s32.totalorder %s21, 7
      %p46 = scmp.ne.s32.totalorder %s41, %s43
      %p47 = scmp.eq.s32.totalorder %s21, 0
      %p48 = por %p46, %p47
      %p49 = scmp.ne.s32.totalorder %s41, %s43
      %p50 = scmp.eq.s32.totalorder %s26, 7
      %p51 = por %p49, %p50
      %p52 = scmp.ne.s32.totalorder %s43, %s44
      %p53 = scmp.eq.s32.totalorder %s26, 0
      %p54 = por %p52, %p53
      %p55 = scmp.ne.s32.totalorder %s43, %s44
      %p56 = scmp.eq.s32.totalorder %s27, 7
      %p57 = por %p55, %p56
      %p59 = scmp.ne.s32.totalorder %s44, %s58
      %p60 = scmp.eq.s32.totalorder %s27, 0
      %p61 = por %p59, %p60
      %s62 = ssub.s32 %s28, %s40
      %p63 = scmp.eq.s32.totalorder %s62, 0
      %s65 = sadd.s32 %s64, 1
      %s66 = scalar_select %p63, %s64, %s65
      %p69 = pneg %p63
      %p70 = scmp.eq.s32.totalorder %s21, 7
      %p71 = por %p69, %p70
      %p72 = scmp.ne.s32.totalorder %s64, %s67
      %p73 = scmp.eq.s32.totalorder %s21, 0
      %p74 = por %p72, %p73
      %p75 = scmp.ne.s32.totalorder %s64, %s67
      %p76 = scmp.eq.s32.totalorder %s26, 7
      %p77 = por %p75, %p76
      %p78 = scmp.ne.s32.totalorder %s67, %s68
      %p79 = scmp.eq.s32.totalorder %s26, 0
      %p80 = por %p78, %p79
      %p81 = scmp.ne.s32.totalorder %s67, %s68
      %p82 = scmp.eq.s32.totalorder %s27, 7
      %p83 = por %p81, %p82
      %p85 = scmp.ne.s32.totalorder %s68, %s84
      %p86 = scmp.eq.s32.totalorder %s27, 0
      %p87 = por %p85, %p86
      %s88 = ssub.s32 %s29, %s36
      %s89 = ssub.s32 %s28, %s40
      %s90 = sor.u32 %s88, %s89
      %p91 = scmp.eq.s32.totalorder %s90, 0
      %s93 = sadd.s32 %s92, 1
      %s94 = scalar_select %p91, %s92, %s93
      %p97 = pneg %p91
      %p98 = scmp.eq.s32.totalorder %s21, 7
      %p99 = por %p97, %p98
      %p100 = scmp.ne.s32.totalorder %s92, %s95
      %p101 = scmp.eq.s32.totalorder %s21, 0
      %p102 = por %p100, %p101
      %p103 = scmp.ne.s32.totalorder %s92, %s95
      %p104 = scmp.eq.s32.totalorder %s26, 7
      %p105 = por %p103, %p104
      %p106 = scmp.ne.s32.totalorder %s95, %s96
      %p107 = scmp.eq.s32.totalorder %s26, 0
      %p108 = por %p106, %p107
      %p109 = scmp.ne.s32.totalorder %s95, %s96
      %p110 = scmp.eq.s32.totalorder %s27, 7
      %p111 = por %p109, %p110
      %p113 = scmp.ne.s32.totalorder %s96, %s112
      %p114 = scmp.eq.s32.totalorder %s27, 0
      %p115 = por %p113, %p114
      %s117 = sadd.s32 %s116, 1
      %p120 = scmp.eq.s32.totalorder %s21, 7
      %p121 = scmp.ne.s32.totalorder %s116, %s118
      %p122 = scmp.eq.s32.totalorder %s21, 0
      %p123 = por %p121, %p122
      %p124 = scmp.ne.s32.totalorder %s116, %s118
      %p125 = scmp.eq.s32.totalorder %s26, 7
      %p126 = por %p124, %p125
      %p127 = scmp.ne.s32.totalorder %s118, %s119
      %p128 = scmp.eq.s32.totalorder %s26, 0
      %p129 = por %p127, %p128
      %p130 = scmp.ne.s32.totalorder %s118, %s119
      %p131 = scmp.eq.s32.totalorder %s27, 7
      %p132 = por %p130, %p131
      %p134 = scmp.ne.s32.totalorder %s119, %s133
      %p135 = scmp.eq.s32.totalorder %s27, 0
      %p136 = por %p134, %p135
      %s138 = sadd.s32 %s137, 1
      %p141 = scmp.eq.s32.totalorder %s21, 7
      %p142 = scmp.ne.s32.totalorder %s137, %s139
      %p143 = scmp.eq.s32.totalorder %s21, 0
      %p144 = por %p142, %p143
      %p145 = scmp.ne.s32.totalorder %s137, %s139
      %p146 = scmp.eq.s32.totalorder %s26, 7
      %p147 = por %p145, %p146
      %p148 = scmp.ne.s32.totalorder %s139, %s140
      %p149 = scmp.eq.s32.totalorder %s26, 0
      %p150 = por %p148, %p149
      %p151 = scmp.ne.s32.totalorder %s139, %s140
      %p152 = scmp.eq.s32.totalorder %s27, 7
      %p153 = por %p151, %p152
      %p155 = scmp.ne.s32.totalorder %s140, %s154
      %p156 = scmp.eq.s32.totalorder %s27, 0
      %p157 = por %p155, %p156
      %s159 = sadd.s32 %s158, 1
      %p162 = scmp.eq.s32.totalorder %s21, 7
      %p163 = scmp.ne.s32.totalorder %s158, %s160
      %p164 = scmp.eq.s32.totalorder %s21, 0
      %p165 = por %p163, %p164
      %p166 = scmp.ne.s32.totalorder %s158, %s160
      %p167 = scmp.eq.s32.totalorder %s26, 7
      %p168 = por %p166, %p167
      %p169 = scmp.ne.s32.totalorder %s160, %s161
      %p170 = scmp.eq.s32.totalorder %s26, 0
      %p171 = por %p169, %p170
      %p172 = scmp.ne.s32.totalorder %s160, %s161
      %p173 = scmp.eq.s32.totalorder %s27, 7
      %p174 = por %p172, %p173
      %p176 = scmp.ne.s32.totalorder %s161, %s175
      %p177 = scmp.eq.s32.totalorder %s27, 0
      %p178 = por %p176, %p177
      %p179 = scmp.le.s32.totalorder 1, %s21
      %p180 = scmp.lt.s32.totalorder %s21, 9
      %p181 = pnand %p179, %p180
      %p182 = pneg %p181
      // Predicated region
      $region9: #{_dino_forward.1} parent=5 // pred_check
        _
      $region10: #{_dino_forward.1} parent=5 // pred_check_branch
        %184 = sbr.rel (%p181) target = $region12
      $region11: #{_dino_forward.1} parent=5 // pred_region
        %s185 = ssub.s32 %s21, 1
        // Predicated region
        $region13: #{_dino_forward.1} parent=11 // pred_check
          %p186 = pneg %p54
        $region14: #{_dino_forward.1} parent=11 // pred_check_branch
          %188 = sbr.rel (%p186) target = $region16
        $region15: #{_dino_forward.1} parent=11 // pred_region
          _
        $region16: #{_dino_forward.1} parent=11 // pred_fallthru
          _
        // Predicated region
        $region17: #{_dino_forward.1} parent=11 // pred_check
          %p189 = pneg %p129
        $region18: #{_dino_forward.1} parent=11 // pred_check_branch
          %191 = sbr.rel (%p189) target = $region20
        $region19: #{_dino_forward.1} parent=11 // pred_region
          _
        $region20: #{_dino_forward.1} parent=11 // pred_fallthru
          _
      $region12: #{_dino_forward.1} parent=5 // pred_fallthru
        _
      %p192 = scmp.lt.s32.totalorder %s21, 8
      // Predicated region
      $region21: #{_dino_forward.1} parent=5 // pred_check
        %p193 = pneg %p192
      $region22: #{_dino_forward.1} parent=5 // pred_check_branch
        %195 = sbr.rel (%p193) target = $region24
      $region23: #{_dino_forward.1} parent=5 // pred_region
        // Predicated region
        $region25: #{_dino_forward.1} parent=23 // pred_check
          %p196 = pneg %p74
        $region26: #{_dino_forward.1} parent=23 // pred_check_branch
          %198 = sbr.rel (%p196) target = $region28
        $region27: #{_dino_forward.1} parent=23 // pred_region
          #allocation18 [shape = 'u32[6]{0}', space=smem, size = 0x18, scoped, tag = 'DMA stride descriptor']
          %s199 = sand.u32 %s64, 1
          %s200 = scalar_lea.sflag [#allocation10], %s199
          %s201 = sand.u32 %s64, 1
          %s202 = smul.addr %s201, 32
          %s203 = scalar_lea.vmem [#allocation9], %s202
          %s204 = smul.u32 2, %s28
          %206 = vsyncadd %s200, 0
          %s207 = smul.addr %s204, 8
          %s208 = scalar_lea.hbm %s1, %s207
          %s210 = sshll.u32 1, 14
          %s211 = sxor.u32 4294967295, %s210
          %s213 = sld [smem:[#allocation0]]
          %s214 = sadd.s32 2, %s213
          %s216 = sshll.u32 7, 26
          %s217 = sxor.u32 4294967295, %s216
          %s218 = sand.u32 0, %s217
          %s219 = sshll.u32 %s214, 26
          %s220 = sor.u32 %s218, %s219
          %s221 = sshll.u32 %s208, 4
          %s222 = int_to_ptr.hbm [resolvable:$true] %s221
          %s223 = sshll.u32 %s203, 4
          %s224 = int_to_ptr.vmem [resolvable:$true] %s223
          %230 = sst [smem:[#allocation18]] 512
          %s231 = scalar_lea.smem [#allocation18], 1
          %232 = sst [smem:[%s231]] 256
          %s233 = scalar_lea.smem [#allocation18], 2
          %234 = sst [smem:[%s233]] 2
          %s235 = scalar_lea.smem [#allocation18], 3
          %236 = sst [smem:[%s235]] 128
          %s237 = scalar_lea.smem [#allocation18], 4
          %238 = sst [smem:[%s237]] 128
          %s239 = scalar_lea.smem [#allocation18], 5
          %240 = sst [smem:[%s239]] 8
          %242 = dma.general %s222, 512, %s224, %s200, [#allocation17], [#allocation18], %s220, 0
        $region28: #{_dino_forward.1} parent=23 // pred_fallthru
          _
        // Predicated region
        $region29: #{_dino_forward.1} parent=23 // pred_check
          %p243 = pneg %p102
        $region30: #{_dino_forward.1} parent=23 // pred_check_branch
          %245 = sbr.rel (%p243) target = $region32
        $region31: #{_dino_forward.1} parent=23 // pred_region
          %s246 = sand.u32 %s92, 1
          %s247 = scalar_lea.sflag [#allocation14], %s246
          %s248 = sand.u32 %s92, 1
          %s249 = smul.addr %s248, 16
          %s250 = scalar_lea.vmem [#allocation13], %s249
          %s251 = smul.u32 2, %s28
          %253 = vsyncadd %s247, 0
          %s254 = smul.addr %s29, 4
          %s255 = sadd.s32 %s251, %s254
          %s256 = smul.addr %s255, 8
          %s257 = scalar_lea.hbm %s2, %s256
          %s258 = sshll.u32 %s257, 4
          %s259 = int_to_ptr.hbm [resolvable:$true] %s258
          %s260 = sshll.u32 %s250, 4
          %s261 = int_to_ptr.vmem [resolvable:$true] %s260
          %266 = dma.hbm_to_vmem [thread:$0]  %s259, 256, %s261, %s247, 128, 128, 8
        $region32: #{_dino_forward.1} parent=23 // pred_fallthru
          _
      $region24: #{_dino_forward.1} parent=5 // pred_fallthru
        _
      %p267 = scmp.le.s32.totalorder 1, %s21
      %p268 = scmp.lt.s32.totalorder %s21, 9
      %p269 = pnand %p267, %p268
      %p270 = pneg %p269
      // Predicated region
      $region33: #{_dino_forward.1} parent=5 // pred_check
        _
      $region34: #{_dino_forward.1} parent=5 // pred_check_branch
        %272 = sbr.rel (%p269) target = $region36
      $region35: #{_dino_forward.1} parent=5 // pred_region
        %s273 = ssub.s32 %s21, 1
        %s274 = sand.u32 %s67, 1
        %s275 = scalar_lea.sflag [#allocation10], %s274
        %s276 = sand.u32 %s67, 1
        %s277 = smul.addr %s276, 32
        %s278 = scalar_lea.vmem [#allocation9], %s277
        // Predicated region
        $region37: #{_dino_forward.1} parent=35 // pred_check
          %p279 = pneg %p80
        $region38: #{_dino_forward.1} parent=35 // pred_check_branch
          %281 = sbr.rel (%p279) target = $region40
        $region39: #{_dino_forward.1} parent=35 // pred_region
          %283 = dma.done %s275, 512
        $region40: #{_dino_forward.1} parent=35 // pred_fallthru
          _
        %s284 = sand.u32 %s95, 1
        %s285 = scalar_lea.sflag [#allocation14], %s284
        %s286 = sand.u32 %s95, 1
        %s287 = smul.addr %s286, 16
        %s288 = scalar_lea.vmem [#allocation13], %s287
        // Predicated region
        $region41: #{_dino_forward.1} parent=35 // pred_check
          %p289 = pneg %p108
        $region42: #{_dino_forward.1} parent=35 // pred_check_branch
          %291 = sbr.rel (%p289) target = $region44
        $region43: #{_dino_forward.1} parent=35 // pred_region
          %293 = dma.done %s285, 256
        $region44: #{_dino_forward.1} parent=35 // pred_fallthru
          _
        %p294 = pneg %p54
        %p295 = pneg %p51
        %s296 = sand.u32 %s67, 1
        %s297 = scalar_lea.sflag [#allocation10], %s296
        %s298 = sand.u32 %s67, 1
        %s299 = smul.addr %s298, 32
        %s300 = scalar_lea.vmem [#allocation9], %s299
        %p301 = pneg %p80
        %p302 = pneg %p77
        %s303 = sand.u32 %s95, 1
        %s304 = scalar_lea.sflag [#allocation14], %s303
        %s305 = sand.u32 %s95, 1
        %s306 = smul.addr %s305, 16
        %s307 = scalar_lea.vmem [#allocation13], %s306
        %p308 = pneg %p108
        %p309 = pneg %p105
        %p310 = pneg %p129
        %p311 = pneg %p126
        %p312 = pneg %p150
        %p313 = pneg %p147
        %p314 = pneg %p171
        %p315 = pneg %p168
        %s316 = smul.u32 2, %s30
        %s317 = smul.u32 2, %s30
        %p318 = scmp.eq.s32.totalorder %s30, 0
        %p319 = scmp.eq.s32.totalorder %s31, 0
        %p320 = pnand %p318, %p319
        %p321 = pneg %p320
        // Predicated region
        $region45: #{_dino_forward.1} parent=35 // pred_check
          _
        $region46: #{_dino_forward.1} parent=35 // pred_check_branch
          %323 = sbr.rel (%p320) target = $region48
        $region47: #{_dino_forward.1} parent=35 // pred_region
          %324 = vst [vmem:[#allocation5] sm:$0xff] 0.0
          %325 = vst [vmem:[#allocation5 + $0x8] sm:$0xff] 0.0
          %vm326 = vcmask 7168
          %327 = vst.msk [vmem:[#allocation6] sm:$0xff] %vm326, 0.0
          %328 = vst.msk [vmem:[#allocation6 + $0x8] sm:$0xff] %vm326, 0.0
          %329 = vst [vmem:[#allocation7] sm:$0x1] 0.0
        $region48: #{_dino_forward.1} parent=35 // pred_fallthru
          _
        // Predicated region
        $region49: #{_dino_forward.1} parent=35 // pred_check
          %p330 = pneg %p319
        $region50: #{_dino_forward.1} parent=35 // pred_check_branch
          %332 = sbr.rel (%p330) target = $region52
        $region51: #{_dino_forward.1} parent=35 // pred_region
          %s333 = sld [smem:[#allocation8]]
          %v334 = vld [vmem:[%s278] sm:$0xff]
          %v335 = vld [vmem:[%s278 + $0x8] sm:$0xff]
          %v336 = vld [vmem:[%s278 + $0x10] sm:$0xff]
          %v337 = vld [vmem:[%s278 + $0x18] sm:$0xff]
          %v338 = vld [vmem:[%s3] sm:$0x1]
          %v340 = vperm.slane %v338, 0
          %v342 = vsub.f32 %v334, %v340
          %v343 = vsub.f32 %v335, %v340
          %v344 = vsub.f32 %v336, %v340
          %v345 = vsub.f32 %v337, %v340
          %v346 = vstv %s333
          %v347 = vmul.f32 %v342, %v346
          %v348 = vmul.f32 %v343, %v346
          %v349 = vmul.f32 %v344, %v346
          %v350 = vmul.f32 %v345, %v346
          %351 = vmax.xlane.f32.xlu0 %v347
          %v352 = vpop.xlane.xlu0 %351
          %353 = vmax.xlane.f32.xlu0 %v348
          %v354 = vpop.xlane.xlu0 %353
          %355 = vmax.xlane.f32.xlu0 %v349
          %v356 = vpop.xlane.xlu0 %355
          %357 = vmax.xlane.f32.xlu0 %v350
          %v358 = vpop.xlane.xlu0 %357
          %v359 = vsub.f32 %v347, %v352
          %v360 = vsub.f32 %v348, %v354
          %v361 = vsub.f32 %v349, %v356
          %v362 = vsub.f32 %v350, %v358
          %v363 = vmul.f32 %v359, 1.442695
          %v364 = vpow.pop %v363
          %v365 = vmul.f32 %v360, 1.442695
          %v366 = vpow.pop %v365
          %v367 = vmul.f32 %v361, 1.442695
          %v368 = vpow.pop %v367
          %v369 = vmul.f32 %v362, 1.442695
          %v370 = vpow.pop %v369
          %371 = vadd.xlane.f32.xlu0 %v364
          %v372 = vpop.xlane.xlu0 %371
          %373 = vadd.xlane.f32.xlu0 %v366
          %v374 = vpop.xlane.xlu0 %373
          %375 = vadd.xlane.f32.xlu0 %v368
          %v376 = vpop.xlane.xlu0 %375
          %377 = vadd.xlane.f32.xlu0 %v370
          %v378 = vpop.xlane.xlu0 %377
          %v379 = vrcp.pop %v372
          %v380 = vmul.f32 %v372, %v379
          %v381 = vsub.f32 1.0, %v380
          %v382 = vmul.f32 %v379, %v381
          %v383 = vadd.f32 %v379, %v382
          %vm384 = vweird.f32 %v372
          %vm385 = vweird.f32 %v379
          %vm386 = vmor %vm384, %vm385
          %v387 = vsel %vm386, %v379, %v383
          %v388 = vand.u32 2147483647, %v372
          %vm389 = vcmp.eq.f32.partialorder %v388, 8.507059e+37
          %v390 = vand.u32 %v372, 2147483648
          %v391 = vor.u32 1.1754944e-38, %v390
          %v392 = vsel %vm389, %v391, %v387
          %v393 = vmul.f32 %v364, %v392
          %v394 = vrcp.pop %v374
          %v395 = vmul.f32 %v374, %v394
          %v396 = vsub.f32 1.0, %v395
          %v397 = vmul.f32 %v394, %v396
          %v398 = vadd.f32 %v394, %v397
          %vm399 = vweird.f32 %v374
          %vm400 = vweird.f32 %v394
          %vm401 = vmor %vm399, %vm400
          %v402 = vsel %vm401, %v394, %v398
          %v403 = vand.u32 2147483647, %v374
          %vm404 = vcmp.eq.f32.partialorder %v403, 8.507059e+37
          %v405 = vand.u32 %v374, 2147483648
          %v406 = vor.u32 1.1754944e-38, %v405
          %v407 = vsel %vm404, %v406, %v402
          %v408 = vmul.f32 %v366, %v407
          %v409 = vrcp.pop %v376
          %v410 = vmul.f32 %v376, %v409
          %v411 = vsub.f32 1.0, %v410
          %v412 = vmul.f32 %v409, %v411
          %v413 = vadd.f32 %v409, %v412
          %vm414 = vweird.f32 %v376
          %vm415 = vweird.f32 %v409
          %vm416 = vmor %vm414, %vm415
          %v417 = vsel %vm416, %v409, %v413
          %v418 = vand.u32 2147483647, %v376
          %vm419 = vcmp.eq.f32.partialorder %v418, 8.507059e+37
          %v420 = vand.u32 %v376, 2147483648
          %v421 = vor.u32 1.1754944e-38, %v420
          %v422 = vsel %vm419, %v421, %v417
          %v423 = vmul.f32 %v368, %v422
          %v424 = vrcp.pop %v378
          %v425 = vmul.f32 %v378, %v424
          %v426 = vsub.f32 1.0, %v425
          %v427 = vmul.f32 %v424, %v426
          %v428 = vadd.f32 %v424, %v427
          %vm429 = vweird.f32 %v378
          %vm430 = vweird.f32 %v424
          %vm431 = vmor %vm429, %vm430
          %v432 = vsel %vm431, %v424, %v428
          %v433 = vand.u32 2147483647, %v378
          %vm434 = vcmp.eq.f32.partialorder %v433, 8.507059e+37
          %v435 = vand.u32 %v378, 2147483648
          %v436 = vor.u32 1.1754944e-38, %v435
          %v437 = vsel %vm434, %v436, %v432
          %v438 = vmul.f32 %v370, %v437
          %v439 = vpack.c.bf16 %v393, %v393
          %v440 = vpack.c.bf16 %v408, %v408
          %v441 = vpack.c.bf16 %v423, %v423
          %v442 = vpack.c.bf16 %v438, %v438
          %443 = vst [vmem:[#allocation2] sm:$0xf] %v439
          %444 = vst [vmem:[#allocation2 + $0x4] sm:$0xf] %v440
          %445 = vst [vmem:[#allocation2 + $0x8] sm:$0xf] %v441
          %446 = vst [vmem:[#allocation2 + $0xc] sm:$0xf] %v442
          %v447 = vunpack.c.l.bf16 %v439
          %v448 = vunpack.c.l.bf16 %v440
          %v449 = vunpack.c.l.bf16 %v441
          %v450 = vunpack.c.l.bf16 %v442
          %v451 = vadd.f32 %v447, %v449
          %v452 = vadd.f32 %v448, %v450
          %v453 = vpack.c.bf16 %v451, %v451
          %v454 = vpack.c.bf16 %v452, %v452
          %455 = vst [vmem:[#allocation3] sm:$0xf] %v453
          %456 = vst [vmem:[#allocation3 + $0x4] sm:$0xf] %v454
          %v457 = vunpack.c.l.bf16 %v453
          %v458 = vunpack.c.l.bf16 %v454
          %459 = vadd.xlane.f32.xlu0 %v457
          %v460 = vpop.xlane.xlu0 %459
          %461 = vadd.xlane.f32.xlu0 %v458
          %v462 = vpop.xlane.xlu0 %461
          %s463 = scalar_lea.vmem [#allocation4], 32
          %vm464 = vcmask 7168
          %465 = vst.msk [vmem:[%s463] sm:$0xff] %vm464, %v460
          %466 = vst.msk [vmem:[%s463 + $0x8] sm:$0xff] %vm464, %v462
          %467 = vadd.xlane.f32.xlu0 %v447
          %v468 = vpop.xlane.xlu0 %467
          %469 = vadd.xlane.f32.xlu0 %v448
          %v470 = vpop.xlane.xlu0 %469
          %471 = vst.msk [vmem:[#allocation4] sm:$0xff] %vm464, %v468
          %472 = vst.msk [vmem:[#allocation4 + $0x8] sm:$0xff] %vm464, %v470
          %473 = vadd.xlane.f32.xlu0 %v449
          %v474 = vpop.xlane.xlu0 %473
          %475 = vadd.xlane.f32.xlu0 %v450
          %v476 = vpop.xlane.xlu0 %475
          %s477 = scalar_lea.vmem [#allocation4], 16
          %478 = vst.msk [vmem:[%s477] sm:$0xff] %vm464, %v474
          %479 = vst.msk [vmem:[%s477 + $0x8] sm:$0xff] %vm464, %v476
          %v480 = vld [vmem:[#allocation7] sm:$0x1]
          %v481 = vadd.f32 %v334, %v336
          %v482 = vadd.f32 %v335, %v337
          %v483 = vadd.f32 %v481, %v482
          %v484 = vrot.slane %v483, 4
          %v485 = vadd.f32 %v483, %v484
          %v486 = vrot.slane %v485, 2
          %v487 = vadd.f32 %v485, %v486
          %v488 = vrot.slane %v487, 1
          %v489 = vadd.f32 %v487, %v488
          %v490 = vadd.f32 %v480, %v489
          %491 = vst [vmem:[#allocation7] sm:$0x1] %v490
        $region52: #{_dino_forward.1} parent=35 // pred_fallthru
          _
        %p492 = scmp.eq.s32.totalorder %s30, 1
        %p493 = pnand %p319, %p492
        %p494 = pneg %p493
        // Predicated region
        $region53: #{_dino_forward.1} parent=35 // pred_check
          _
        $region54: #{_dino_forward.1} parent=35 // pred_check_branch
          %496 = sbr.rel (%p493) target = $region56
        $region55: #{_dino_forward.1} parent=35 // pred_region
          %v497 = vld [vmem:[#allocation7] sm:$0x1]
          %v498 = vmul.f32 %v497, 0.015625
          %v499 = vld [vmem:[%s3] sm:$0x1]
          %v500 = vmul.f32 %v499, 0.9
          %v501 = vmul.f32 %v498, 0.1
          %v502 = vadd.f32 %v500, %v501
          %503 = vst [vmem:[#allocation16] sm:$0x1] %v502
        $region56: #{_dino_forward.1} parent=35 // pred_fallthru
          _
        %v504 = vld [vmem:[%s288] sm:$0xff]
        %v505 = vld [vmem:[%s288 + $0x8] sm:$0xff]
        %v506 = vmul.f32 %v504, 10.0
        %v507 = vmul.f32 %v505, 10.0
        %508 = vmax.xlane.f32.xlu0 %v506
        %v509 = vpop.xlane.xlu0 %508
        %510 = vmax.xlane.f32.xlu0 %v507
        %v511 = vpop.xlane.xlu0 %510
        %v512 = vsub.f32 %v506, %v509
        %v513 = vsub.f32 %v507, %v511
        %v514 = vmul.f32 %v512, 1.442695
        %v515 = vpow.pop %v514
        %v516 = vmul.f32 %v513, 1.442695
        %v517 = vpow.pop %v516
        %518 = vadd.xlane.f32.xlu0 %v515
        %v519 = vpop.xlane.xlu0 %518
        %520 = vadd.xlane.f32.xlu0 %v517
        %v521 = vpop.xlane.xlu0 %520
        %v522 = vlog2.pop %v519
        %v523 = vmul.f32 %v522, 0.6931472
        %v524 = vlog2.pop %v521
        %v525 = vmul.f32 %v524, 0.6931472
        %v526 = vadd.f32 %v509, %v523
        %v527 = vadd.f32 %v511, %v525
        %v528 = vld [vmem:[#allocation3] sm:$0xf]
        %v529 = vld [vmem:[#allocation3 + $0x4] sm:$0xf]
        %v530 = vunpack.c.l.bf16 %v528
        %v531 = vunpack.c.l.bf16 %v529
        %p532 = scmp.lt.s32.totalorder %s31, 2
        // Predicated region
        $region57: #{_dino_forward.1} parent=35 // pred_check
          %p533 = pneg %p532
        $region58: #{_dino_forward.1} parent=35 // pred_check_branch
          %535 = sbr.rel (%p533) target = $region60
        $region59: #{_dino_forward.1} parent=35 // pred_region
          %s536 = smul.u32 %s31, 2
          %s537 = smul.addr %s536, 4
          %s538 = scalar_lea.vmem [#allocation2], %s537
          %v539 = vld [vmem:[%s538] sm:$0xf]
          %v540 = vld [vmem:[%s538 + $0x4] sm:$0xf]
          %v541 = vunpack.c.l.bf16 %v539
          %v542 = vunpack.c.l.bf16 %v540
          %v543 = vsub.f32 %v530, %v541
          %v544 = vsub.f32 %v531, %v542
          %v545 = vld [vmem:[#allocation5] sm:$0xff]
          %v546 = vld [vmem:[#allocation5 + $0x8] sm:$0xff]
          %v547 = vmul.f32 %v543, %v506
          %v548 = vmul.f32 %v544, %v507
          %v549 = vadd.f32 %v545, %v547
          %v550 = vadd.f32 %v546, %v548
          %551 = vst [vmem:[#allocation5] sm:$0xff] %v549
          %552 = vst [vmem:[#allocation5 + $0x8] sm:$0xff] %v550
          %v553 = vld [vmem:[#allocation6] sm:$0xff]
          %v554 = vld [vmem:[#allocation6 + $0x8] sm:$0xff]
          %s555 = scalar_lea.vmem [#allocation4], 32
          %v556 = vld [vmem:[%s555] sm:$0xff]
          %v557 = vld [vmem:[%s555 + $0x8] sm:$0xff]
          %s558 = smul.u32 %s31, 16
          %s559 = scalar_lea.vmem [#allocation4], %s558
          %v560 = vld [vmem:[%s559] sm:$0xff]
          %v561 = vld [vmem:[%s559 + $0x8] sm:$0xff]
          %v562 = vsub.f32 %v556, %v560
          %v563 = vsub.f32 %v557, %v561
          %v564 = vmul.f32 %v562, %v526
          %v565 = vmul.f32 %v563, %v527
          %v566 = vadd.f32 %v553, %v564
          %v567 = vadd.f32 %v554, %v565
          %vm568 = vcmask 7168
          %569 = vst.msk [vmem:[#allocation6] sm:$0xff] %vm568, %v566
          %570 = vst.msk [vmem:[#allocation6 + $0x8] sm:$0xff] %vm568, %v567
        $region60: #{_dino_forward.1} parent=35 // pred_fallthru
          _
        %p571 = scmp.ge.s32.totalorder %s31, 2
        // Predicated region
        $region61: #{_dino_forward.1} parent=35 // pred_check
          %p572 = pneg %p571
        $region62: #{_dino_forward.1} parent=35 // pred_check_branch
          %574 = sbr.rel (%p572) target = $region64
        $region63: #{_dino_forward.1} parent=35 // pred_region
          %v575 = vld [vmem:[#allocation5] sm:$0xff]
          %v576 = vld [vmem:[#allocation5 + $0x8] sm:$0xff]
          %v577 = vmul.f32 %v530, %v506
          %v578 = vmul.f32 %v531, %v507
          %v579 = vadd.f32 %v575, %v577
          %v580 = vadd.f32 %v576, %v578
          %581 = vst [vmem:[#allocation5] sm:$0xff] %v579
          %582 = vst [vmem:[#allocation5 + $0x8] sm:$0xff] %v580
          %v583 = vld [vmem:[#allocation6] sm:$0xff]
          %v584 = vld [vmem:[#allocation6 + $0x8] sm:$0xff]
          %s585 = scalar_lea.vmem [#allocation4], 32
          %v586 = vld [vmem:[%s585] sm:$0xff]
          %v587 = vld [vmem:[%s585 + $0x8] sm:$0xff]
          %v588 = vmul.f32 %v586, %v526
          %v589 = vmul.f32 %v587, %v527
          %v590 = vadd.f32 %v583, %v588
          %v591 = vadd.f32 %v584, %v589
          %vm592 = vcmask 7168
          %593 = vst.msk [vmem:[#allocation6] sm:$0xff] %vm592, %v590
          %594 = vst.msk [vmem:[#allocation6 + $0x8] sm:$0xff] %vm592, %v591
        $region64: #{_dino_forward.1} parent=35 // pred_fallthru
          _
        %p595 = scmp.eq.s32.totalorder %s31, 3
        %p596 = pnand %p492, %p595
        %p597 = pneg %p596
        // Predicated region
        $region65: #{_dino_forward.1} parent=35 // pred_check
          _
        $region66: #{_dino_forward.1} parent=35 // pred_check_branch
          %599 = sbr.rel (%p596) target = $region68
        $region67: #{_dino_forward.1} parent=35 // pred_region
          %v600 = vld [vmem:[#allocation6] sm:$0xff]
          %v601 = vld [vmem:[#allocation6 + $0x8] sm:$0xff]
          %vm602 = vcmask 7168
          %v603 = vsel %vm602, %v600, 0.0
          %v604 = vsel %vm602, %v601, 0.0
          %v605 = vadd.f32 %v603, %v604
          %606 = vadd.xlane.f32.xlu0 %v605
          %v607 = vpop.xlane.xlu0 %606
          %v608 = vrot.slane %v607, 4
          %v609 = vadd.f32 %v607, %v608
          %v610 = vrot.slane %v609, 2
          %v611 = vadd.f32 %v609, %v610
          %v612 = vrot.slane %v611, 1
          %v613 = vadd.f32 %v611, %v612
          %s614 = vtos %v613
          %v615 = vld [vmem:[#allocation5] sm:$0xff]
          %v616 = vld [vmem:[#allocation5 + $0x8] sm:$0xff]
          %v617 = vadd.f32 %v615, %v616
          %618 = vadd.xlane.f32.xlu0 %v617
          %v619 = vpop.xlane.xlu0 %618
          %v620 = vrot.slane %v619, 4
          %v621 = vadd.f32 %v619, %v620
          %v622 = vrot.slane %v621, 2
          %v623 = vadd.f32 %v621, %v622
          %v624 = vrot.slane %v623, 1
          %v625 = vadd.f32 %v623, %v624
          %s626 = vtos %v625
          %s627 = ssub.f32 %s614, %s626
          %s628 = smul.f32 %s627, 0.0052083335
          %s629 = scalar_lea.smem [#allocation15], 0
          %630 = sst [smem:[%s629]] %s628
        $region68: #{_dino_forward.1} parent=35 // pred_fallthru
          _
        // Predicated region
        $region69: #{_dino_forward.1} parent=35 // pred_check
          %p631 = pneg %p147
        $region70: #{_dino_forward.1} parent=35 // pred_check_branch
          %633 = sbr.rel (%p631) target = $region72
        $region71: #{_dino_forward.1} parent=35 // pred_region
          %635 = vsyncadd [#allocation12], 0
          %s637 = sshll.u32 %s4, 4
          %s638 = int_to_ptr.hbm [resolvable:$true] %s637
          %640 = dma.smem_to_hbm [#allocation15], 16, %s638, [#allocation12]
        $region72: #{_dino_forward.1} parent=35 // pred_fallthru
          _
        // Predicated region
        $region73: #{_dino_forward.1} parent=35 // pred_check
          %p641 = pneg %p168
        $region74: #{_dino_forward.1} parent=35 // pred_check_branch
          %643 = sbr.rel (%p641) target = $region76
        $region75: #{_dino_forward.1} parent=35 // pred_region
          %645 = vsyncadd [#allocation11], 0
          %s647 = sshll.u32 [#allocation16], 4
          %s648 = int_to_ptr.vmem [resolvable:$true] %s647
          %s649 = sshll.u32 %s5, 4
          %s650 = int_to_ptr.hbm [resolvable:$true] %s649
          %652 = dma.vmem_to_hbm [thread:$0]  %s648, 16, %s650, [#allocation11]
        $region76: #{_dino_forward.1} parent=35 // pred_fallthru
          _
        // Predicated region
        $region77: #{_dino_forward.1} parent=35 // pred_check
          %p653 = pneg %p147
        $region78: #{_dino_forward.1} parent=35 // pred_check_branch
          %655 = sbr.rel (%p653) target = $region80
        $region79: #{_dino_forward.1} parent=35 // pred_region
          %657 = dma.done [#allocation12], 16
        $region80: #{_dino_forward.1} parent=35 // pred_fallthru
          _
        // Predicated region
        $region81: #{_dino_forward.1} parent=35 // pred_check
          %p658 = pneg %p168
        $region82: #{_dino_forward.1} parent=35 // pred_check_branch
          %660 = sbr.rel (%p658) target = $region84
        $region83: #{_dino_forward.1} parent=35 // pred_region
          %662 = dma.done [#allocation11], 16
        $region84: #{_dino_forward.1} parent=35 // pred_fallthru
          _
        %663 = sfence
      $region36: #{_dino_forward.1} parent=5 // pred_fallthru
        _
      %p664 = scmp.le.s32.totalorder 2, %s21
      // Predicated region
      $region85: #{_dino_forward.1} parent=5 // pred_check
        %p665 = pneg %p664
      $region86: #{_dino_forward.1} parent=5 // pred_check_branch
        %667 = sbr.rel (%p665) target = $region88
      $region87: #{_dino_forward.1} parent=5 // pred_region
        %s668 = ssub.s32 %s21, 2
      $region88: #{_dino_forward.1} parent=5 // pred_fallthru
        _
    $region6: #{_dino_forward.1} parent=1 // loop_footer
      %s25 = sadd.s32 1, %s21
    $region7: #{_dino_forward.1} parent=1 // loop_footer_branch
      %20 = sbr.rel target = $region3
    $region8: #{_dino_forward.1} parent=1 // loop_exit
      _
    %669 = vsyncpa [#allocation10], 1
    %s670 = scalar_lea.sflag [#allocation10], 1
    %671 = vsyncpa %s670, 1
    %672 = vsyncpa [#allocation14], 1
    %s673 = scalar_lea.sflag [#allocation14], 1
    %674 = vsyncpa %s673, 1
    %675 = vsyncpa [#allocation11], 1
    %s676 = scalar_lea.sflag [#allocation11], 1
    %677 = vsyncpa %s676, 1
    %678 = vsyncpa [#allocation12], 1
    %s679 = scalar_lea.sflag [#allocation12], 1
    %680 = vsyncpa %s679, 1

</llo_original>
